<compile_context>
chip_gen: v7x
topology: tpu7x:2x2x1
jax: 0.10.0
libtpu: 0.0.40
codegen_flags: <defaults>
</compile_context>

<pallas_src>
import functools

import jax
import jax.numpy as jnp
from jax import lax
from jax.experimental import pallas as pl
from jax.experimental.pallas import tpu as pltpu

# ----------------------------- model dims -----------------------------------
VOCAB_SIZE = 100
SEQ_LEN = 8
HIDDEN = 32          # LSTM hidden size (fc input)
BERT_DIM = 768       # rbt3 hidden size (LSTM input size)
NUM_TAGS = 8         # fc output size
BATCH = 2


# --------------------------- Pallas kernel ----------------------------------
def lstm_fc_kernel(x_ref, wih_ref, whh_ref, b_ref, wfc_ref, bfc_ref,
                   out_ref, *, seq_len, batch):
    """Single-shot fused LSTM + fc.

    x_ref:   (S*B, 768) time-major flattened features (row = t*B + b)
    wih_ref: (768, 4H)  input->gates weights (pre-transposed)
    whh_ref: (H, 4H)    hidden->gates weights (pre-transposed)
    b_ref:   (1, 4H)    combined bias (b_ih + b_hh)
    wfc_ref: (H, 8)     fc weight (pre-transposed)
    bfc_ref: (1, 8)     fc bias
    out_ref: (S*B, 8)   scores, same row ordering as x_ref
    """
    H = whh_ref.shape[0]

    # (1) Input projection for ALL timesteps, hoisted out of the recurrence:
    #     one (S*B,768)x(768,4H) MXU matmul instead of S tiny (B,768) ones.
    proj = (jnp.dot(x_ref[...], wih_ref[...],
                    preferred_element_type=jnp.float32)
            + b_ref[...])                                   # (S*B, 4H)

    # Hoist the recurrent weight load out of the unrolled loop.
    whh = whh_ref[...]                                      # (H, 4H)

    # (2) Sequential recurrence, fully unrolled (S is small and static).
    #     The serialized critical path only carries the (B,H)x(H,4H) matmul
    #     plus the elementwise gate math; h/c stay in vregs.
    h = jnp.zeros((batch, H), jnp.float32)
    c = jnp.zeros((batch, H), jnp.float32)
    hs = []
    for t in range(seq_len):
        gates = proj[t * batch:(t + 1) * batch, :] + jnp.dot(
            h, whh, preferred_element_type=jnp.float32)     # (B, 4H)
        # PyTorch LSTM gate ordering: i, f, g, o
        i = jax.nn.sigmoid(gates[:, 0:H])
        f = jax.nn.sigmoid(gates[:, H:2 * H])
        g = jnp.tanh(gates[:, 2 * H:3 * H])
        o = jax.nn.sigmoid(gates[:, 3 * H:4 * H])
        c = f * c + i * g
        h = o * jnp.tanh(c)
        hs.append(h)

    # (3) All per-step hidden states stay in vregs; final fc is ONE matmul
    #     with a single output store.
    h_all = jnp.concatenate(hs, axis=0)                     # (S*B, H)
    out_ref[...] = (jnp.dot(h_all, wfc_ref[...],
                            preferred_element_type=jnp.float32)
                    + bfc_ref[...]).astype(out_ref.dtype)


def lstm_fc_forward(feats_bsd, wih_t, whh_t, bias, wfc_t, bfc):
    """feats_bsd: (B, S, 768) float32 -> scores (B, S, 8) float32."""
    B, S, D = feats_bsd.shape
    H = whh_t.shape[0]

    # Time-major flatten: row t*B + b holds (timestep t, batch b).
    feats_flat = jnp.transpose(feats_bsd, (1, 0, 2)).reshape(S * B, D)

    flops = 2 * S * B * (D * 4 * H + H * 4 * H + H * NUM_TAGS)
    transcendentals = S * B * (4 * H + H)      # gate sigmoids/tanh + tanh(c)
    bytes_accessed = 4 * (S * B * D + D * 4 * H + H * 4 * H + 4 * H
                          + H * NUM_TAGS + NUM_TAGS + S * B * NUM_TAGS)

    kernel = functools.partial(lstm_fc_kernel, seq_len=S, batch=B)

    out_flat = pl.pallas_call(
        kernel,
        out_shape=jax.ShapeDtypeStruct((S * B, NUM_TAGS), jnp.float32),
        in_specs=[pl.BlockSpec(memory_space=pltpu.MemorySpace.VMEM)] * 6,
        out_specs=pl.BlockSpec(memory_space=pltpu.MemorySpace.VMEM),
        cost_estimate=pl.CostEstimate(flops=flops,
                                      transcendentals=transcendentals,
                                      bytes_accessed=bytes_accessed),
    )(feats_flat, wih_t, whh_t, bias, wfc_t, bfc)

    out_sbt = out_flat.reshape(S, B, NUM_TAGS)      # (S, B, 8)
    return jnp.transpose(out_sbt, (1, 0, 2))        # (B, S, 8)


# --------------------------- parameter init ---------------------------------
def init_params(key):
    ks = jax.random.split(key, 7)
    bound_lstm = 1.0 / jnp.sqrt(HIDDEN)
    bound_fc = 1.0 / jnp.sqrt(HIDDEN)
    # PyTorch LSTM stores W_ih (4H, 768), W_hh (4H, H); we keep transposed copies.
    w_ih = jax.random.uniform(ks[0], (4 * HIDDEN, BERT_DIM), jnp.float32,
                              -bound_lstm, bound_lstm)
    w_hh = jax.random.uniform(ks[1], (4 * HIDDEN, HIDDEN), jnp.float32,
                              -bound_lstm, bound_lstm)
    b_ih = jax.random.uniform(ks[2], (4 * HIDDEN,), jnp.float32,
                              -bound_lstm, bound_lstm)
    b_hh = jax.random.uniform(ks[3], (4 * HIDDEN,), jnp.float32,
                              -bound_lstm, bound_lstm)
    w_fc = jax.random.uniform(ks[4], (NUM_TAGS, HIDDEN), jnp.float32,
                              -bound_fc, bound_fc)
    b_fc = jax.random.uniform(ks[5], (NUM_TAGS,), jnp.float32,
                              -bound_fc, bound_fc)
    # Stand-in "pretrained" token / type embedding tables (see TODO below).
    tok_emb = jax.random.normal(ks[6], (VOCAB_SIZE, BERT_DIM), jnp.float32) * 0.02
    type_emb = jax.random.normal(jax.random.PRNGKey(1), (2, BERT_DIM),
                                 jnp.float32) * 0.02
    return dict(
        wih_t=w_ih.T, whh_t=w_hh.T,
        bias=(b_ih + b_hh)[None, :],
        wfc_t=w_fc.T, bfc=b_fc[None, :],
        tok_emb=tok_emb, type_emb=type_emb,
    )


def transformer_forward(params, x, x_mask, x_typeid):
    # TODO(synk): the frozen HuggingFace 'hfl/rbt3' encoder cannot be reproduced
    # in-script; its last_hidden_state is stood in for by a deterministic
    # token + token-type embedding lookup, masked by the attention mask.
    feats = (params["tok_emb"][x] + params["type_emb"][x_typeid]) \
            * x_mask[..., None].astype(jnp.float32)        # (B, S, 768)
    return lstm_fc_forward(feats, params["wih_t"], params["whh_t"],
                           params["bias"], params["wfc_t"], params["bfc"])


# --------------------------- pure-JAX reference ------------------------------
def lstm_fc_ref(feats_bsd, wih_t, whh_t, bias, wfc_t, bfc):
    B = feats_bsd.shape[0]
    H = whh_t.shape[0]

    def step(carry, x_t):
        h, c = carry
        gates = x_t @ wih_t + h @ whh_t + bias
        i = jax.nn.sigmoid(gates[:, 0:H])
        f = jax.nn.sigmoid(gates[:, H:2 * H])
        g = jnp.tanh(gates[:, 2 * H:3 * H])
        o = jax.nn.sigmoid(gates[:, 3 * H:4 * H])
        c = f * c + i * g
        h = o * jnp.tanh(c)
        return (h, c), h @ wfc_t + bfc

    init = (jnp.zeros((B, H), jnp.float32), jnp.zeros((B, H), jnp.float32))
    _, outs = lax.scan(step, init, jnp.transpose(feats_bsd, (1, 0, 2)))
    return jnp.transpose(outs, (1, 0, 2))


# ---------------------------------- main -------------------------------------
if __name__ == "__main__":
    key = jax.random.PRNGKey(0)
    params = init_params(key)

    kx, km = jax.random.split(jax.random.PRNGKey(2))
    x = jax.random.randint(kx, (BATCH, SEQ_LEN), 0, VOCAB_SIZE, jnp.int32)
    x_mask = jnp.ones((BATCH, SEQ_LEN), jnp.int32)
    x_typeid = jnp.zeros((BATCH, SEQ_LEN), jnp.int32)

    score = transformer_forward(params, x, x_mask, x_typeid)
    score = jax.block_until_ready(score)
    assert score.shape == (BATCH, SEQ_LEN, NUM_TAGS)

    # correctness check against a pure-JAX LSTM+fc reference
    feats = (params["tok_emb"][x] + params["type_emb"][x_typeid]) \
            * x_mask[..., None].astype(jnp.float32)
    ref = lstm_fc_ref(feats, params["wih_t"], params["whh_t"],
                      params["bias"], params["wfc_t"], params["bfc"])
    assert jnp.allclose(score, ref, atol=1e-4, rtol=1e-4)

    print("KERNEL_OK")
</pallas_src>

<mosaic_0001>
module attributes {stable_mosaic.version = 11 : i64} {
  func.func @lstm_fc_kernel(%arg0: memref<16x768xf32, #tpu.memory_space<vmem>>, %arg1: memref<768x128xf32, #tpu.memory_space<vmem>>, %arg2: memref<32x128xf32, #tpu.memory_space<vmem>>, %arg3: memref<1x128xf32, #tpu.memory_space<vmem>>, %arg4: memref<32x8xf32, #tpu.memory_space<vmem>>, %arg5: memref<1x8xf32, #tpu.memory_space<vmem>>, %arg6: memref<16x8xf32, #tpu.memory_space<vmem>>) attributes {dimension_semantics = [], scalar_prefetch = 0 : i64, scratch_operands = 0 : i64, tpu.core_type = #tpu.core_type<tc>} {
    %c0 = arith.constant 0 : index
    %c0_0 = arith.constant 0 : index
    %0 = vector.load %arg0[%c0, %c0_0] : memref<16x768xf32, #tpu.memory_space<vmem>>, vector<16x768xf32>
    %c0_1 = arith.constant 0 : index
    %c0_2 = arith.constant 0 : index
    %1 = vector.load %arg1[%c0_1, %c0_2] : memref<768x128xf32, #tpu.memory_space<vmem>>, vector<768x128xf32>
    %cst = arith.constant dense<0.000000e+00> : vector<16x128xf32>
    %2 = tpu.matmul %0, %1, %cst {dimension_numbers = #tpu.dot_dimension_numbers<[1], [0], [0], [1], [0, 0, 1, 1], [], []>} : vector<16x768xf32>, vector<768x128xf32>, vector<16x128xf32> -> vector<16x128xf32>
    %c0_3 = arith.constant 0 : index
    %c0_4 = arith.constant 0 : index
    %3 = vector.load %arg3[%c0_3, %c0_4] : memref<1x128xf32, #tpu.memory_space<vmem>>, vector<1x128xf32>
    %4 = vector.broadcast %3 : vector<1x128xf32> to vector<16x128xf32>
    %5 = arith.addf %2, %4 : vector<16x128xf32>
    %c0_5 = arith.constant 0 : index
    %c0_6 = arith.constant 0 : index
    %6 = vector.load %arg2[%c0_5, %c0_6] : memref<32x128xf32, #tpu.memory_space<vmem>>, vector<32x128xf32>
    %cst_7 = arith.constant 0.000000e+00 : f32
    %7 = vector.broadcast %cst_7 : f32 to vector<2x32xf32>
    %cst_8 = arith.constant 0.000000e+00 : f32
    %8 = vector.broadcast %cst_8 : f32 to vector<2x32xf32>
    %9 = vector.extract_strided_slice %5 {offsets = [0, 0], sizes = [2, 128], strides = [1, 1]} : vector<16x128xf32> to vector<2x128xf32>
    %cst_9 = arith.constant dense<0.000000e+00> : vector<2x128xf32>
    %10 = tpu.matmul %7, %6, %cst_9 {dimension_numbers = #tpu.dot_dimension_numbers<[1], [0], [0], [1], [0, 0, 1, 1], [], []>} : vector<2x32xf32>, vector<32x128xf32>, vector<2x128xf32> -> vector<2x128xf32>
    %11 = arith.addf %9, %10 : vector<2x128xf32>
    %12 = vector.extract_strided_slice %11 {offsets = [0, 0], sizes = [2, 32], strides = [1, 1]} : vector<2x128xf32> to vector<2x32xf32>
    %13 = arith.negf %12 : vector<2x32xf32>
    %14 = math.exp %13 : vector<2x32xf32>
    %cst_10 = arith.constant 1.000000e+00 : f32
    %15 = vector.broadcast %cst_10 : f32 to vector<2x32xf32>
    %16 = arith.addf %15, %14 : vector<2x32xf32>
    %17 = arith.divf %15, %16 : vector<2x32xf32>
    %18 = vector.extract_strided_slice %11 {offsets = [0, 32], sizes = [2, 32], strides = [1, 1]} : vector<2x128xf32> to vector<2x32xf32>
    %19 = arith.negf %18 : vector<2x32xf32>
    %20 = math.exp %19 : vector<2x32xf32>
    %cst_11 = arith.constant 1.000000e+00 : f32
    %21 = vector.broadcast %cst_11 : f32 to vector<2x32xf32>
    %22 = arith.addf %21, %20 : vector<2x32xf32>
    %23 = arith.divf %21, %22 : vector<2x32xf32>
    %24 = vector.extract_strided_slice %11 {offsets = [0, 64], sizes = [2, 32], strides = [1, 1]} : vector<2x128xf32> to vector<2x32xf32>
    %25 = math.tanh %24 : vector<2x32xf32>
    %26 = vector.extract_strided_slice %11 {offsets = [0, 96], sizes = [2, 32], strides = [1, 1]} : vector<2x128xf32> to vector<2x32xf32>
    %27 = arith.negf %26 : vector<2x32xf32>
    %28 = math.exp %27 : vector<2x32xf32>
    %cst_12 = arith.constant 1.000000e+00 : f32
    %29 = vector.broadcast %cst_12 : f32 to vector<2x32xf32>
    %30 = arith.addf %29, %28 : vector<2x32xf32>
    %31 = arith.divf %29, %30 : vector<2x32xf32>
    %32 = arith.mulf %23, %8 : vector<2x32xf32>
    %33 = arith.mulf %17, %25 : vector<2x32xf32>
    %34 = arith.addf %32, %33 : vector<2x32xf32>
    %35 = math.tanh %34 : vector<2x32xf32>
    %36 = arith.mulf %31, %35 : vector<2x32xf32>
    %37 = vector.extract_strided_slice %5 {offsets = [2, 0], sizes = [2, 128], strides = [1, 1]} : vector<16x128xf32> to vector<2x128xf32>
    %cst_13 = arith.constant dense<0.000000e+00> : vector<2x128xf32>
    %38 = tpu.matmul %36, %6, %cst_13 {dimension_numbers = #tpu.dot_dimension_numbers<[1], [0], [0], [1], [0, 0, 1, 1], [], []>} : vector<2x32xf32>, vector<32x128xf32>, vector<2x128xf32> -> vector<2x128xf32>
    %39 = arith.addf %37, %38 : vector<2x128xf32>
    %40 = vector.extract_strided_slice %39 {offsets = [0, 0], sizes = [2, 32], strides = [1, 1]} : vector<2x128xf32> to vector<2x32xf32>
    %41 = arith.negf %40 : vector<2x32xf32>
    %42 = math.exp %41 : vector<2x32xf32>
    %cst_14 = arith.constant 1.000000e+00 : f32
    %43 = vector.broadcast %cst_14 : f32 to vector<2x32xf32>
    %44 = arith.addf %43, %42 : vector<2x32xf32>
    %45 = arith.divf %43, %44 : vector<2x32xf32>
    %46 = vector.extract_strided_slice %39 {offsets = [0, 32], sizes = [2, 32], strides = [1, 1]} : vector<2x128xf32> to vector<2x32xf32>
    %47 = arith.negf %46 : vector<2x32xf32>
    %48 = math.exp %47 : vector<2x32xf32>
    %cst_15 = arith.constant 1.000000e+00 : f32
    %49 = vector.broadcast %cst_15 : f32 to vector<2x32xf32>
    %50 = arith.addf %49, %48 : vector<2x32xf32>
    %51 = arith.divf %49, %50 : vector<2x32xf32>
    %52 = vector.extract_strided_slice %39 {offsets = [0, 64], sizes = [2, 32], strides = [1, 1]} : vector<2x128xf32> to vector<2x32xf32>
    %53 = math.tanh %52 : vector<2x32xf32>
    %54 = vector.extract_strided_slice %39 {offsets = [0, 96], sizes = [2, 32], strides = [1, 1]} : vector<2x128xf32> to vector<2x32xf32>
    %55 = arith.negf %54 : vector<2x32xf32>
    %56 = math.exp %55 : vector<2x32xf32>
    %cst_16 = arith.constant 1.000000e+00 : f32
    %57 = vector.broadcast %cst_16 : f32 to vector<2x32xf32>
    %58 = arith.addf %57, %56 : vector<2x32xf32>
    %59 = arith.divf %57, %58 : vector<2x32xf32>
    %60 = arith.mulf %51, %34 : vector<2x32xf32>
    %61 = arith.mulf %45, %53 : vector<2x32xf32>
    %62 = arith.addf %60, %61 : vector<2x32xf32>
    %63 = math.tanh %62 : vector<2x32xf32>
    %64 = arith.mulf %59, %63 : vector<2x32xf32>
    %65 = vector.extract_strided_slice %5 {offsets = [4, 0], sizes = [2, 128], strides = [1, 1]} : vector<16x128xf32> to vector<2x128xf32>
    %cst_17 = arith.constant dense<0.000000e+00> : vector<2x128xf32>
    %66 = tpu.matmul %64, %6, %cst_17 {dimension_numbers = #tpu.dot_dimension_numbers<[1], [0], [0], [1], [0, 0, 1, 1], [], []>} : vector<2x32xf32>, vector<32x128xf32>, vector<2x128xf32> -> vector<2x128xf32>
    %67 = arith.addf %65, %66 : vector<2x128xf32>
    %68 = vector.extract_strided_slice %67 {offsets = [0, 0], sizes = [2, 32], strides = [1, 1]} : vector<2x128xf32> to vector<2x32xf32>
    %69 = arith.negf %68 : vector<2x32xf32>
    %70 = math.exp %69 : vector<2x32xf32>
    %cst_18 = arith.constant 1.000000e+00 : f32
    %71 = vector.broadcast %cst_18 : f32 to vector<2x32xf32>
    %72 = arith.addf %71, %70 : vector<2x32xf32>
    %73 = arith.divf %71, %72 : vector<2x32xf32>
    %74 = vector.extract_strided_slice %67 {offsets = [0, 32], sizes = [2, 32], strides = [1, 1]} : vector<2x128xf32> to vector<2x32xf32>
    %75 = arith.negf %74 : vector<2x32xf32>
    %76 = math.exp %75 : vector<2x32xf32>
    %cst_19 = arith.constant 1.000000e+00 : f32
    %77 = vector.broadcast %cst_19 : f32 to vector<2x32xf32>
    %78 = arith.addf %77, %76 : vector<2x32xf32>
    %79 = arith.divf %77, %78 : vector<2x32xf32>
    %80 = vector.extract_strided_slice %67 {offsets = [0, 64], sizes = [2, 32], strides = [1, 1]} : vector<2x128xf32> to vector<2x32xf32>
    %81 = math.tanh %80 : vector<2x32xf32>
    %82 = vector.extract_strided_slice %67 {offsets = [0, 96], sizes = [2, 32], strides = [1, 1]} : vector<2x128xf32> to vector<2x32xf32>
    %83 = arith.negf %82 : vector<2x32xf32>
    %84 = math.exp %83 : vector<2x32xf32>
    %cst_20 = arith.constant 1.000000e+00 : f32
    %85 = vector.broadcast %cst_20 : f32 to vector<2x32xf32>
    %86 = arith.addf %85, %84 : vector<2x32xf32>
    %87 = arith.divf %85, %86 : vector<2x32xf32>
    %88 = arith.mulf %79, %62 : vector<2x32xf32>
    %89 = arith.mulf %73, %81 : vector<2x32xf32>
    %90 = arith.addf %88, %89 : vector<2x32xf32>
    %91 = math.tanh %90 : vector<2x32xf32>
    %92 = arith.mulf %87, %91 : vector<2x32xf32>
    %93 = vector.extract_strided_slice %5 {offsets = [6, 0], sizes = [2, 128], strides = [1, 1]} : vector<16x128xf32> to vector<2x128xf32>
    %cst_21 = arith.constant dense<0.000000e+00> : vector<2x128xf32>
    %94 = tpu.matmul %92, %6, %cst_21 {dimension_numbers = #tpu.dot_dimension_numbers<[1], [0], [0], [1], [0, 0, 1, 1], [], []>} : vector<2x32xf32>, vector<32x128xf32>, vector<2x128xf32> -> vector<2x128xf32>
    %95 = arith.addf %93, %94 : vector<2x128xf32>
    %96 = vector.extract_strided_slice %95 {offsets = [0, 0], sizes = [2, 32], strides = [1, 1]} : vector<2x128xf32> to vector<2x32xf32>
    %97 = arith.negf %96 : vector<2x32xf32>
    %98 = math.exp %97 : vector<2x32xf32>
    %cst_22 = arith.constant 1.000000e+00 : f32
    %99 = vector.broadcast %cst_22 : f32 to vector<2x32xf32>
    %100 = arith.addf %99, %98 : vector<2x32xf32>
    %101 = arith.divf %99, %100 : vector<2x32xf32>
    %102 = vector.extract_strided_slice %95 {offsets = [0, 32], sizes = [2, 32], strides = [1, 1]} : vector<2x128xf32> to vector<2x32xf32>
    %103 = arith.negf %102 : vector<2x32xf32>
    %104 = math.exp %103 : vector<2x32xf32>
    %cst_23 = arith.constant 1.000000e+00 : f32
    %105 = vector.broadcast %cst_23 : f32 to vector<2x32xf32>
    %106 = arith.addf %105, %104 : vector<2x32xf32>
    %107 = arith.divf %105, %106 : vector<2x32xf32>
    %108 = vector.extract_strided_slice %95 {offsets = [0, 64], sizes = [2, 32], strides = [1, 1]} : vector<2x128xf32> to vector<2x32xf32>
    %109 = math.tanh %108 : vector<2x32xf32>
    %110 = vector.extract_strided_slice %95 {offsets = [0, 96], sizes = [2, 32], strides = [1, 1]} : vector<2x128xf32> to vector<2x32xf32>
    %111 = arith.negf %110 : vector<2x32xf32>
    %112 = math.exp %111 : vector<2x32xf32>
    %cst_24 = arith.constant 1.000000e+00 : f32
    %113 = vector.broadcast %cst_24 : f32 to vector<2x32xf32>
    %114 = arith.addf %113, %112 : vector<2x32xf32>
    %115 = arith.divf %113, %114 : vector<2x32xf32>
    %116 = arith.mulf %107, %90 : vector<2x32xf32>
    %117 = arith.mulf %101, %109 : vector<2x32xf32>
    %118 = arith.addf %116, %117 : vector<2x32xf32>
    %119 = math.tanh %118 : vector<2x32xf32>
    %120 = arith.mulf %115, %119 : vector<2x32xf32>
    %121 = vector.extract_strided_slice %5 {offsets = [8, 0], sizes = [2, 128], strides = [1, 1]} : vector<16x128xf32> to vector<2x128xf32>
    %cst_25 = arith.constant dense<0.000000e+00> : vector<2x128xf32>
    %122 = tpu.matmul %120, %6, %cst_25 {dimension_numbers = #tpu.dot_dimension_numbers<[1], [0], [0], [1], [0, 0, 1, 1], [], []>} : vector<2x32xf32>, vector<32x128xf32>, vector<2x128xf32> -> vector<2x128xf32>
    %123 = arith.addf %121, %122 : vector<2x128xf32>
    %124 = vector.extract_strided_slice %123 {offsets = [0, 0], sizes = [2, 32], strides = [1, 1]} : vector<2x128xf32> to vector<2x32xf32>
    %125 = arith.negf %124 : vector<2x32xf32>
    %126 = math.exp %125 : vector<2x32xf32>
    %cst_26 = arith.constant 1.000000e+00 : f32
    %127 = vector.broadcast %cst_26 : f32 to vector<2x32xf32>
    %128 = arith.addf %127, %126 : vector<2x32xf32>
    %129 = arith.divf %127, %128 : vector<2x32xf32>
    %130 = vector.extract_strided_slice %123 {offsets = [0, 32], sizes = [2, 32], strides = [1, 1]} : vector<2x128xf32> to vector<2x32xf32>
    %131 = arith.negf %130 : vector<2x32xf32>
    %132 = math.exp %131 : vector<2x32xf32>
    %cst_27 = arith.constant 1.000000e+00 : f32
    %133 = vector.broadcast %cst_27 : f32 to vector<2x32xf32>
    %134 = arith.addf %133, %132 : vector<2x32xf32>
    %135 = arith.divf %133, %134 : vector<2x32xf32>
    %136 = vector.extract_strided_slice %123 {offsets = [0, 64], sizes = [2, 32], strides = [1, 1]} : vector<2x128xf32> to vector<2x32xf32>
    %137 = math.tanh %136 : vector<2x32xf32>
    %138 = vector.extract_strided_slice %123 {offsets = [0, 96], sizes = [2, 32], strides = [1, 1]} : vector<2x128xf32> to vector<2x32xf32>
    %139 = arith.negf %138 : vector<2x32xf32>
    %140 = math.exp %139 : vector<2x32xf32>
    %cst_28 = arith.constant 1.000000e+00 : f32
    %141 = vector.broadcast %cst_28 : f32 to vector<2x32xf32>
    %142 = arith.addf %141, %140 : vector<2x32xf32>
    %143 = arith.divf %141, %142 : vector<2x32xf32>
    %144 = arith.mulf %135, %118 : vector<2x32xf32>
    %145 = arith.mulf %129, %137 : vector<2x32xf32>
    %146 = arith.addf %144, %145 : vector<2x32xf32>
    %147 = math.tanh %146 : vector<2x32xf32>
    %148 = arith.mulf %143, %147 : vector<2x32xf32>
    %149 = vector.extract_strided_slice %5 {offsets = [10, 0], sizes = [2, 128], strides = [1, 1]} : vector<16x128xf32> to vector<2x128xf32>
    %cst_29 = arith.constant dense<0.000000e+00> : vector<2x128xf32>
    %150 = tpu.matmul %148, %6, %cst_29 {dimension_numbers = #tpu.dot_dimension_numbers<[1], [0], [0], [1], [0, 0, 1, 1], [], []>} : vector<2x32xf32>, vector<32x128xf32>, vector<2x128xf32> -> vector<2x128xf32>
    %151 = arith.addf %149, %150 : vector<2x128xf32>
    %152 = vector.extract_strided_slice %151 {offsets = [0, 0], sizes = [2, 32], strides = [1, 1]} : vector<2x128xf32> to vector<2x32xf32>
    %153 = arith.negf %152 : vector<2x32xf32>
    %154 = math.exp %153 : vector<2x32xf32>
    %cst_30 = arith.constant 1.000000e+00 : f32
    %155 = vector.broadcast %cst_30 : f32 to vector<2x32xf32>
    %156 = arith.addf %155, %154 : vector<2x32xf32>
    %157 = arith.divf %155, %156 : vector<2x32xf32>
    %158 = vector.extract_strided_slice %151 {offsets = [0, 32], sizes = [2, 32], strides = [1, 1]} : vector<2x128xf32> to vector<2x32xf32>
    %159 = arith.negf %158 : vector<2x32xf32>
    %160 = math.exp %159 : vector<2x32xf32>
    %cst_31 = arith.constant 1.000000e+00 : f32
    %161 = vector.broadcast %cst_31 : f32 to vector<2x32xf32>
    %162 = arith.addf %161, %160 : vector<2x32xf32>
    %163 = arith.divf %161, %162 : vector<2x32xf32>
    %164 = vector.extract_strided_slice %151 {offsets = [0, 64], sizes = [2, 32], strides = [1, 1]} : vector<2x128xf32> to vector<2x32xf32>
    %165 = math.tanh %164 : vector<2x32xf32>
    %166 = vector.extract_strided_slice %151 {offsets = [0, 96], sizes = [2, 32], strides = [1, 1]} : vector<2x128xf32> to vector<2x32xf32>
    %167 = arith.negf %166 : vector<2x32xf32>
    %168 = math.exp %167 : vector<2x32xf32>
    %cst_32 = arith.constant 1.000000e+00 : f32
    %169 = vector.broadcast %cst_32 : f32 to vector<2x32xf32>
    %170 = arith.addf %169, %168 : vector<2x32xf32>
    %171 = arith.divf %169, %170 : vector<2x32xf32>
    %172 = arith.mulf %163, %146 : vector<2x32xf32>
    %173 = arith.mulf %157, %165 : vector<2x32xf32>
    %174 = arith.addf %172, %173 : vector<2x32xf32>
    %175 = math.tanh %174 : vector<2x32xf32>
    %176 = arith.mulf %171, %175 : vector<2x32xf32>
    %177 = vector.extract_strided_slice %5 {offsets = [12, 0], sizes = [2, 128], strides = [1, 1]} : vector<16x128xf32> to vector<2x128xf32>
    %cst_33 = arith.constant dense<0.000000e+00> : vector<2x128xf32>
    %178 = tpu.matmul %176, %6, %cst_33 {dimension_numbers = #tpu.dot_dimension_numbers<[1], [0], [0], [1], [0, 0, 1, 1], [], []>} : vector<2x32xf32>, vector<32x128xf32>, vector<2x128xf32> -> vector<2x128xf32>
    %179 = arith.addf %177, %178 : vector<2x128xf32>
    %180 = vector.extract_strided_slice %179 {offsets = [0, 0], sizes = [2, 32], strides = [1, 1]} : vector<2x128xf32> to vector<2x32xf32>
    %181 = arith.negf %180 : vector<2x32xf32>
    %182 = math.exp %181 : vector<2x32xf32>
    %cst_34 = arith.constant 1.000000e+00 : f32
    %183 = vector.broadcast %cst_34 : f32 to vector<2x32xf32>
    %184 = arith.addf %183, %182 : vector<2x32xf32>
    %185 = arith.divf %183, %184 : vector<2x32xf32>
    %186 = vector.extract_strided_slice %179 {offsets = [0, 32], sizes = [2, 32], strides = [1, 1]} : vector<2x128xf32> to vector<2x32xf32>
    %187 = arith.negf %186 : vector<2x32xf32>
    %188 = math.exp %187 : vector<2x32xf32>
    %cst_35 = arith.constant 1.000000e+00 : f32
    %189 = vector.broadcast %cst_35 : f32 to vector<2x32xf32>
    %190 = arith.addf %189, %188 : vector<2x32xf32>
    %191 = arith.divf %189, %190 : vector<2x32xf32>
    %192 = vector.extract_strided_slice %179 {offsets = [0, 64], sizes = [2, 32], strides = [1, 1]} : vector<2x128xf32> to vector<2x32xf32>
    %193 = math.tanh %192 : vector<2x32xf32>
    %194 = vector.extract_strided_slice %179 {offsets = [0, 96], sizes = [2, 32], strides = [1, 1]} : vector<2x128xf32> to vector<2x32xf32>
    %195 = arith.negf %194 : vector<2x32xf32>
    %196 = math.exp %195 : vector<2x32xf32>
    %cst_36 = arith.constant 1.000000e+00 : f32
    %197 = vector.broadcast %cst_36 : f32 to vector<2x32xf32>
    %198 = arith.addf %197, %196 : vector<2x32xf32>
    %199 = arith.divf %197, %198 : vector<2x32xf32>
    %200 = arith.mulf %191, %174 : vector<2x32xf32>
    %201 = arith.mulf %185, %193 : vector<2x32xf32>
    %202 = arith.addf %200, %201 : vector<2x32xf32>
    %203 = math.tanh %202 : vector<2x32xf32>
    %204 = arith.mulf %199, %203 : vector<2x32xf32>
    %205 = vector.extract_strided_slice %5 {offsets = [14, 0], sizes = [2, 128], strides = [1, 1]} : vector<16x128xf32> to vector<2x128xf32>
    %cst_37 = arith.constant dense<0.000000e+00> : vector<2x128xf32>
    %206 = tpu.matmul %204, %6, %cst_37 {dimension_numbers = #tpu.dot_dimension_numbers<[1], [0], [0], [1], [0, 0, 1, 1], [], []>} : vector<2x32xf32>, vector<32x128xf32>, vector<2x128xf32> -> vector<2x128xf32>
    %207 = arith.addf %205, %206 : vector<2x128xf32>
    %208 = vector.extract_strided_slice %207 {offsets = [0, 0], sizes = [2, 32], strides = [1, 1]} : vector<2x128xf32> to vector<2x32xf32>
    %209 = arith.negf %208 : vector<2x32xf32>
    %210 = math.exp %209 : vector<2x32xf32>
    %cst_38 = arith.constant 1.000000e+00 : f32
    %211 = vector.broadcast %cst_38 : f32 to vector<2x32xf32>
    %212 = arith.addf %211, %210 : vector<2x32xf32>
    %213 = arith.divf %211, %212 : vector<2x32xf32>
    %214 = vector.extract_strided_slice %207 {offsets = [0, 32], sizes = [2, 32], strides = [1, 1]} : vector<2x128xf32> to vector<2x32xf32>
    %215 = arith.negf %214 : vector<2x32xf32>
    %216 = math.exp %215 : vector<2x32xf32>
    %cst_39 = arith.constant 1.000000e+00 : f32
    %217 = vector.broadcast %cst_39 : f32 to vector<2x32xf32>
    %218 = arith.addf %217, %216 : vector<2x32xf32>
    %219 = arith.divf %217, %218 : vector<2x32xf32>
    %220 = vector.extract_strided_slice %207 {offsets = [0, 64], sizes = [2, 32], strides = [1, 1]} : vector<2x128xf32> to vector<2x32xf32>
    %221 = math.tanh %220 : vector<2x32xf32>
    %222 = vector.extract_strided_slice %207 {offsets = [0, 96], sizes = [2, 32], strides = [1, 1]} : vector<2x128xf32> to vector<2x32xf32>
    %223 = arith.negf %222 : vector<2x32xf32>
    %224 = math.exp %223 : vector<2x32xf32>
    %cst_40 = arith.constant 1.000000e+00 : f32
    %225 = vector.broadcast %cst_40 : f32 to vector<2x32xf32>
    %226 = arith.addf %225, %224 : vector<2x32xf32>
    %227 = arith.divf %225, %226 : vector<2x32xf32>
    %228 = arith.mulf %219, %202 : vector<2x32xf32>
    %229 = arith.mulf %213, %221 : vector<2x32xf32>
    %230 = arith.addf %228, %229 : vector<2x32xf32>
    %231 = math.tanh %230 : vector<2x32xf32>
    %232 = arith.mulf %227, %231 : vector<2x32xf32>
    %233 = tpu.concatenate %36, %64, %92, %120, %148, %176, %204, %232 in 0 : vector<2x32xf32>, vector<2x32xf32>, vector<2x32xf32>, vector<2x32xf32>, vector<2x32xf32>, vector<2x32xf32>, vector<2x32xf32>, vector<2x32xf32> -> vector<16x32xf32>
    %c0_41 = arith.constant 0 : index
    %c0_42 = arith.constant 0 : index
    %234 = vector.load %arg4[%c0_41, %c0_42] : memref<32x8xf32, #tpu.memory_space<vmem>>, vector<32x8xf32>
    %cst_43 = arith.constant dense<0.000000e+00> : vector<16x8xf32>
    %235 = tpu.matmul %233, %234, %cst_43 {dimension_numbers = #tpu.dot_dimension_numbers<[1], [0], [0], [1], [0, 0, 1, 1], [], []>} : vector<16x32xf32>, vector<32x8xf32>, vector<16x8xf32> -> vector<16x8xf32>
    %c0_44 = arith.constant 0 : index
    %c0_45 = arith.constant 0 : index
    %236 = vector.load %arg5[%c0_44, %c0_45] : memref<1x8xf32, #tpu.memory_space<vmem>>, vector<1x8xf32>
    %237 = vector.broadcast %236 : vector<1x8xf32> to vector<16x8xf32>
    %238 = arith.addf %235, %237 : vector<16x8xf32>
    %c0_46 = arith.constant 0 : index
    %c0_47 = arith.constant 0 : index
    %239 = vector.load %arg6[%c0_46, %c0_47] : memref<16x8xf32, #tpu.memory_space<vmem>>, vector<16x8xf32>
    tpu.vector_store %arg6[%c0_46, %c0_47], %238 {strides = array<i32>} : memref<16x8xf32, #tpu.memory_space<vmem>>, vector<16x8xf32>,
    return
  }
}

</mosaic_0001>

<llo_original>
// kernel: tpu_custom_call.1
$region0: #{tpu_custom_call.1}
  #allocation0 [shape = 'u32[]', space=smem, size = 0x4, offset = 0x4, fixed_abs, tag = 'smem constant byte address 0x4 - core index']
  #allocation1 [shape = 'u32[144,128]{1,0:T(1,128)}', space=vmem, size = 0x12000, scoped, tag = 'internal scratch']
  %s0 = inlined_call_operand.hbm [shape: f32[16,768], index: 0, kind: input, shape index: {}]
  %s1 = inlined_call_operand.hbm [shape: f32[768,128], index: 1, kind: input, shape index: {}]
  %s2 = inlined_call_operand.vmem [shape: f32[32,128], index: 2, kind: input, shape index: {}]
  %s3 = inlined_call_operand.vmem [shape: f32[1,128], index: 3, kind: input, shape index: {}]
  %s4 = inlined_call_operand.vmem [shape: f32[32,8], index: 4, kind: input, shape index: {}]
  %s5 = inlined_call_operand.vmem [shape: f32[1,8], index: 5, kind: input, shape index: {}]
  %s6 = inlined_call_operand.vmem [shape: f32[16,8], index: 6, kind: output, shape index: {}]
  %s7 = sld [smem:[#allocation0]]
  $region42: #{tpu_custom_call.1} parent=0
    _
  %s9 = ssub.s32 1, %s7
  %s10 = scalar_select 0, %s9, %s7
  $region1: #{tpu_custom_call.1} parent=0
    #allocation2 [shape = 'u8[49152]{0}', space=vmem, size = 0xc000, scoped, tag = 'input window, operand 0, single buffered']
    #allocation3 [shape = 's32[1]{0}', space=sflag, size = 0x4, scoped, tag = 'scoped memory for tpu_custom_call.1']
    #allocation4 [shape = 'u8[393216]{0}', space=vmem, size = 0x60000, scoped, tag = 'input window, operand 1, single buffered']
    #allocation5 [shape = 's32[1]{0}', space=sflag, size = 0x4, scoped, tag = 'scoped memory for tpu_custom_call.1']
    %11 = vsyncpa [#allocation3], 0
    %12 = vsyncpa [#allocation5], 0
    // Predicated region
    $region2: #{tpu_custom_call.1} parent=1 // pred_check
      _
    $region3: #{tpu_custom_call.1} parent=1 // pred_check_branch
      %14 = sbr.rel (0) target = $region5
    $region4: #{tpu_custom_call.1} parent=1 // pred_region
      %s16 = ssub.s32 1536, 1536
      %17 = vsyncadd [#allocation3], %s16
      %s18 = sshll.u32 [#allocation2], 4
      %s19 = int_to_ptr.vmem [resolvable:$true] %s18
      %24 = dma.hbm_to_vmem [thread:$0]  %s0, 1536, %s19, [#allocation3], 768, 768, 48
    $region5: #{tpu_custom_call.1} parent=1 // pred_fallthru
      _
    // Predicated region
    $region6: #{tpu_custom_call.1} parent=1 // pred_check
      _
    $region7: #{tpu_custom_call.1} parent=1 // pred_check_branch
      %26 = sbr.rel (0) target = $region9
    $region8: #{tpu_custom_call.1} parent=1 // pred_region
      %s28 = ssub.s32 12288, 12288
      %29 = vsyncadd [#allocation5], %s28
      %s30 = sshll.u32 [#allocation4], 4
      %s31 = int_to_ptr.vmem [resolvable:$true] %s30
      %36 = dma.hbm_to_vmem [thread:$0]  %s1, 12288, %s31, [#allocation5], 128, 128, 8
    $region9: #{tpu_custom_call.1} parent=1 // pred_fallthru
      _
    // Predicated region
    $region10: #{tpu_custom_call.1} parent=1 // pred_check
      _
    $region11: #{tpu_custom_call.1} parent=1 // pred_check_branch
      %38 = sbr.rel (0) target = $region13
    $region12: #{tpu_custom_call.1} parent=1 // pred_region
      _
    $region13: #{tpu_custom_call.1} parent=1 // pred_fallthru
      _
    // Predicated region
    $region14: #{tpu_custom_call.1} parent=1 // pred_check
      _
    $region15: #{tpu_custom_call.1} parent=1 // pred_check_branch
      %40 = sbr.rel (0) target = $region17
    $region16: #{tpu_custom_call.1} parent=1 // pred_region
      _
    $region17: #{tpu_custom_call.1} parent=1 // pred_fallthru
      _
    // Predicated region
    $region18: #{tpu_custom_call.1} parent=1 // pred_check
      _
    $region19: #{tpu_custom_call.1} parent=1 // pred_check_branch
      %42 = sbr.rel (0) target = $region21
    $region20: #{tpu_custom_call.1} parent=1 // pred_region
      _
    $region21: #{tpu_custom_call.1} parent=1 // pred_fallthru
      _
    // Predicated region
    $region22: #{tpu_custom_call.1} parent=1 // pred_check
      _
    $region23: #{tpu_custom_call.1} parent=1 // pred_check_branch
      %44 = sbr.rel (0) target = $region25
    $region24: #{tpu_custom_call.1} parent=1 // pred_region
      _
    $region25: #{tpu_custom_call.1} parent=1 // pred_fallthru
      _
    // Predicated region
    $region26: #{tpu_custom_call.1} parent=1 // pred_check
      _
    $region27: #{tpu_custom_call.1} parent=1 // pred_check_branch
      %46 = sbr.rel (0) target = $region29
    $region28: #{tpu_custom_call.1} parent=1 // pred_region
      %47 = dma.done [#allocation3], 1536
    $region29: #{tpu_custom_call.1} parent=1 // pred_fallthru
      _
    // Predicated region
    $region30: #{tpu_custom_call.1} parent=1 // pred_check
      _
    $region31: #{tpu_custom_call.1} parent=1 // pred_check_branch
      %49 = sbr.rel (0) target = $region33
    $region32: #{tpu_custom_call.1} parent=1 // pred_region
      %50 = dma.done [#allocation5], 12288
    $region33: #{tpu_custom_call.1} parent=1 // pred_fallthru
      _
    %v51 = vld [vmem:[#allocation2] sm:$0xff]
    %v52 = vld [vmem:[#allocation2 + $0x8] sm:$0xff]
    %v53 = vld [vmem:[#allocation2 + $0x10] sm:$0xff]
    %v54 = vld [vmem:[#allocation2 + $0x18] sm:$0xff]
    %v55 = vld [vmem:[#allocation2 + $0x20] sm:$0xff]
    %v56 = vld [vmem:[#allocation2 + $0x28] sm:$0xff]
    %v57 = vld [vmem:[#allocation2 + $0x30] sm:$0xff]
    %v58 = vld [vmem:[#allocation2 + $0x38] sm:$0xff]
    %v59 = vld [vmem:[#allocation2 + $0x40] sm:$0xff]
    %v60 = vld [vmem:[#allocation2 + $0x48] sm:$0xff]
    %v61 = vld [vmem:[#allocation2 + $0x50] sm:$0xff]
    %v62 = vld [vmem:[#allocation2 + $0x58] sm:$0xff]
    %v63 = vld [vmem:[#allocation4] sm:$0xff]
    %v64 = vld [vmem:[#allocation4 + $0x8] sm:$0xff]
    %v65 = vld [vmem:[#allocation4 + $0x10] sm:$0xff]
    %v66 = vld [vmem:[#allocation4 + $0x18] sm:$0xff]
    %v67 = vld [vmem:[#allocation4 + $0x20] sm:$0xff]
    %v68 = vld [vmem:[#allocation4 + $0x28] sm:$0xff]
    %v69 = vld [vmem:[#allocation4 + $0x30] sm:$0xff]
    %v70 = vld [vmem:[#allocation4 + $0x38] sm:$0xff]
    %v71 = vld [vmem:[#allocation4 + $0x40] sm:$0xff]
    %v72 = vld [vmem:[#allocation4 + $0x48] sm:$0xff]
    %v73 = vld [vmem:[#allocation4 + $0x50] sm:$0xff]
    %v74 = vld [vmem:[#allocation4 + $0x58] sm:$0xff]
    %v75 = vld [vmem:[#allocation4 + $0x60] sm:$0xff]
    %v76 = vld [vmem:[#allocation4 + $0x68] sm:$0xff]
    %v77 = vld [vmem:[#allocation4 + $0x70] sm:$0xff]
    %v78 = vld [vmem:[#allocation4 + $0x78] sm:$0xff]
    %v79 = vld [vmem:[#allocation4 + $0x80] sm:$0xff]
    %v80 = vld [vmem:[#allocation4 + $0x88] sm:$0xff]
    %v81 = vld [vmem:[#allocation4 + $0x90] sm:$0xff]
    %v82 = vld [vmem:[#allocation4 + $0x98] sm:$0xff]
    %v83 = vld [vmem:[#allocation4 + $0xa0] sm:$0xff]
    %v84 = vld [vmem:[#allocation4 + $0xa8] sm:$0xff]
    %v85 = vld [vmem:[#allocation4 + $0xb0] sm:$0xff]
    %v86 = vld [vmem:[#allocation4 + $0xb8] sm:$0xff]
    %v87 = vld [vmem:[#allocation4 + $0xc0] sm:$0xff]
    %v88 = vld [vmem:[#allocation4 + $0xc8] sm:$0xff]
    %v89 = vld [vmem:[#allocation4 + $0xd0] sm:$0xff]
    %v90 = vld [vmem:[#allocation4 + $0xd8] sm:$0xff]
    %v91 = vld [vmem:[#allocation4 + $0xe0] sm:$0xff]
    %v92 = vld [vmem:[#allocation4 + $0xe8] sm:$0xff]
    %v93 = vld [vmem:[#allocation4 + $0xf0] sm:$0xff]
    %v94 = vld [vmem:[#allocation4 + $0xf8] sm:$0xff]
    %v95 = vld [vmem:[#allocation4 + $0x100] sm:$0xff]
    %v96 = vld [vmem:[#allocation4 + $0x108] sm:$0xff]
    %v97 = vld [vmem:[#allocation4 + $0x110] sm:$0xff]
    %v98 = vld [vmem:[#allocation4 + $0x118] sm:$0xff]
    %v99 = vld [vmem:[#allocation4 + $0x120] sm:$0xff]
    %v100 = vld [vmem:[#allocation4 + $0x128] sm:$0xff]
    %v101 = vld [vmem:[#allocation4 + $0x130] sm:$0xff]
    %v102 = vld [vmem:[#allocation4 + $0x138] sm:$0xff]
    %v103 = vld [vmem:[#allocation4 + $0x140] sm:$0xff]
    %v104 = vld [vmem:[#allocation4 + $0x148] sm:$0xff]
    %v105 = vld [vmem:[#allocation4 + $0x150] sm:$0xff]
    %v106 = vld [vmem:[#allocation4 + $0x158] sm:$0xff]
    %v107 = vld [vmem:[#allocation4 + $0x160] sm:$0xff]
    %v108 = vld [vmem:[#allocation4 + $0x168] sm:$0xff]
    %v109 = vld [vmem:[#allocation4 + $0x170] sm:$0xff]
    %v110 = vld [vmem:[#allocation4 + $0x178] sm:$0xff]
    %v111 = vld [vmem:[#allocation4 + $0x180] sm:$0xff]
    %v112 = vld [vmem:[#allocation4 + $0x188] sm:$0xff]
    %v113 = vld [vmem:[#allocation4 + $0x190] sm:$0xff]
    %v114 = vld [vmem:[#allocation4 + $0x198] sm:$0xff]
    %v115 = vld [vmem:[#allocation4 + $0x1a0] sm:$0xff]
    %v116 = vld [vmem:[#allocation4 + $0x1a8] sm:$0xff]
    %v117 = vld [vmem:[#allocation4 + $0x1b0] sm:$0xff]
    %v118 = vld [vmem:[#allocation4 + $0x1b8] sm:$0xff]
    %v119 = vld [vmem:[#allocation4 + $0x1c0] sm:$0xff]
    %v120 = vld [vmem:[#allocation4 + $0x1c8] sm:$0xff]
    %v121 = vld [vmem:[#allocation4 + $0x1d0] sm:$0xff]
    %v122 = vld [vmem:[#allocation4 + $0x1d8] sm:$0xff]
    %v123 = vld [vmem:[#allocation4 + $0x1e0] sm:$0xff]
    %v124 = vld [vmem:[#allocation4 + $0x1e8] sm:$0xff]
    %v125 = vld [vmem:[#allocation4 + $0x1f0] sm:$0xff]
    %v126 = vld [vmem:[#allocation4 + $0x1f8] sm:$0xff]
    %v127 = vld [vmem:[#allocation4 + $0x200] sm:$0xff]
    %v128 = vld [vmem:[#allocation4 + $0x208] sm:$0xff]
    %v129 = vld [vmem:[#allocation4 + $0x210] sm:$0xff]
    %v130 = vld [vmem:[#allocation4 + $0x218] sm:$0xff]
    %v131 = vld [vmem:[#allocation4 + $0x220] sm:$0xff]
    %v132 = vld [vmem:[#allocation4 + $0x228] sm:$0xff]
    %v133 = vld [vmem:[#allocation4 + $0x230] sm:$0xff]
    %v134 = vld [vmem:[#allocation4 + $0x238] sm:$0xff]
    %v135 = vld [vmem:[#allocation4 + $0x240] sm:$0xff]
    %v136 = vld [vmem:[#allocation4 + $0x248] sm:$0xff]
    %v137 = vld [vmem:[#allocation4 + $0x250] sm:$0xff]
    %v138 = vld [vmem:[#allocation4 + $0x258] sm:$0xff]
    %v139 = vld [vmem:[#allocation4 + $0x260] sm:$0xff]
    %v140 = vld [vmem:[#allocation4 + $0x268] sm:$0xff]
    %v141 = vld [vmem:[#allocation4 + $0x270] sm:$0xff]
    %v142 = vld [vmem:[#allocation4 + $0x278] sm:$0xff]
    %v143 = vld [vmem:[#allocation4 + $0x280] sm:$0xff]
    %v144 = vld [vmem:[#allocation4 + $0x288] sm:$0xff]
    %v145 = vld [vmem:[#allocation4 + $0x290] sm:$0xff]
    %v146 = vld [vmem:[#allocation4 + $0x298] sm:$0xff]
    %v147 = vld [vmem:[#allocation4 + $0x2a0] sm:$0xff]
    %v148 = vld [vmem:[#allocation4 + $0x2a8] sm:$0xff]
    %v149 = vld [vmem:[#allocation4 + $0x2b0] sm:$0xff]
    %v150 = vld [vmem:[#allocation4 + $0x2b8] sm:$0xff]
    %v151 = vld [vmem:[#allocation4 + $0x2c0] sm:$0xff]
    %v152 = vld [vmem:[#allocation4 + $0x2c8] sm:$0xff]
    %v153 = vld [vmem:[#allocation4 + $0x2d0] sm:$0xff]
    %v154 = vld [vmem:[#allocation4 + $0x2d8] sm:$0xff]
    %v155 = vld [vmem:[#allocation4 + $0x2e0] sm:$0xff]
    %v156 = vld [vmem:[#allocation4 + $0x2e8] sm:$0xff]
    %v157 = vld [vmem:[#allocation4 + $0x2f0] sm:$0xff]
    %v158 = vld [vmem:[#allocation4 + $0x2f8] sm:$0xff]
    %v159 = vld [vmem:[%s3] sm:$0x1]
    %v161 = vlaneseq
    %v162 = vshrl.u32 %v161, 7
    %v163 = vsub.s32 0, %v162
    %v164 = vrot.slane %v159, %v163
    %166 = vmatprep.subr.mxu0 0.0
    %167 = vmatpush1.msra.mxu0 %v63
    %168 = vmatprep.subr.mxu0 0.0
    %169 = vmatpush1.msra.mxu0 %v64
    %170 = vmatprep.subr.mxu0 0.0
    %171 = vmatpush1.msra.mxu0 %v65
    %172 = vmatprep.subr.mxu0 0.0
    %173 = vmatpush1.msra.mxu0 %v66
    %174 = vmatprep.subr.mxu0 0.0
    %175 = vmatpush1.msra.mxu0 %v67
    %176 = vmatprep.subr.mxu0 0.0
    %177 = vmatpush1.msra.mxu0 %v68
    %178 = vmatprep.subr.mxu0 0.0
    %179 = vmatpush1.msra.mxu0 %v69
    %180 = vmatprep.subr.mxu0 0.0
    %181 = vmatpush1.msra.mxu0 %v70
    %182 = vmatprep.subr.mxu0 0.0
    %183 = vmatpush1.msra.mxu0 %v71
    %184 = vmatprep.subr.mxu0 0.0
    %185 = vmatpush1.msra.mxu0 %v72
    %186 = vmatprep.subr.mxu0 0.0
    %187 = vmatpush1.msra.mxu0 %v73
    %188 = vmatprep.subr.mxu0 0.0
    %189 = vmatpush1.msra.mxu0 %v74
    %190 = vmatprep.subr.mxu0 0.0
    %191 = vmatpush1.msra.mxu0 %v75
    %192 = vmatprep.subr.mxu0 0.0
    %193 = vmatpush1.msra.mxu0 %v76
    %194 = vmatprep.subr.mxu0 0.0
    %195 = vmatpush1.msra.mxu0 %v77
    %196 = vmatprep.subr.mxu0 0.0
    %197 = vmatpush1.msra.mxu0 %v78
    %198 = vmatprep.subr.mxu0 0.0
    %199 = vmatpush1.msra.mxu0 %v79
    %200 = vmatprep.subr.mxu0 0.0
    %201 = vmatpush1.msra.mxu0 %v80
    %202 = vmatprep.subr.mxu0 0.0
    %203 = vmatpush1.msra.mxu0 %v81
    %204 = vmatprep.subr.mxu0 0.0
    %205 = vmatpush1.msra.mxu0 %v82
    %206 = vmatprep.subr.mxu0 0.0
    %207 = vmatpush1.msra.mxu0 %v83
    %208 = vmatprep.subr.mxu0 0.0
    %209 = vmatpush1.msra.mxu0 %v84
    %210 = vmatprep.subr.mxu0 0.0
    %211 = vmatpush1.msra.mxu0 %v85
    %212 = vmatprep.subr.mxu0 0.0
    %213 = vmatpush1.msra.mxu0 %v86
    %214 = vmatprep.subr.mxu0 0.0
    %215 = vmatpush1.msra.mxu0 %v87
    %216 = vmatprep.subr.mxu0 0.0
    %217 = vmatpush1.msra.mxu0 %v88
    %218 = vmatprep.subr.mxu0 0.0
    %219 = vmatpush1.msra.mxu0 %v89
    %220 = vmatprep.subr.mxu0 0.0
    %221 = vmatpush1.msra.mxu0 %v90
    %222 = vmatprep.subr.mxu0 0.0
    %223 = vmatpush1.msra.mxu0 %v91
    %224 = vmatprep.subr.mxu0 0.0
    %225 = vmatpush1.msra.mxu0 %v92
    %226 = vmatprep.subr.mxu0 0.0
    %227 = vmatpush1.msra.mxu0 %v93
    %228 = vmatprep.subr.mxu0 0.0
    %229 = vmatpush1.msra.mxu0 %v94
    %230 = vmatprep.mubr.f32.mxu0 %v52
    %231 = vmatmul.mubr.f32.gmra.mrb[0].mxu0 %v51
    %v232 = vpop.f32.mrb[0].mxu0
    %v233 = vadd.f32 %v164, %v232
    %v234 = vpop.f32.mrb[0].mxu0
    %235 = vmatprep.mubr.f32.mxu0 %v58
    %236 = vmatmul.mubr.f32.gmra.mrb[0].mxu0 %v57
    %v237 = vpop.f32.mrb[0].mxu0
    %v238 = vadd.f32 %v164, %v237
    %v239 = vpop.f32.mrb[0].mxu0
    %240 = vdwg.mxu0
    %241 = vmatprep.subr.mxu0 0.0
    %242 = vmatpush1.msra.mxu0 %v95
    %243 = vmatprep.subr.mxu0 0.0
    %244 = vmatpush1.msra.mxu0 %v96
    %245 = vmatprep.subr.mxu0 0.0
    %246 = vmatpush1.msra.mxu0 %v97
    %247 = vmatprep.subr.mxu0 0.0
    %248 = vmatpush1.msra.mxu0 %v98
    %249 = vmatprep.subr.mxu0 0.0
    %250 = vmatpush1.msra.mxu0 %v99
    %251 = vmatprep.subr.mxu0 0.0
    %252 = vmatpush1.msra.mxu0 %v100
    %253 = vmatprep.subr.mxu0 0.0
    %254 = vmatpush1.msra.mxu0 %v101
    %255 = vmatprep.subr.mxu0 0.0
    %256 = vmatpush1.msra.mxu0 %v102
    %257 = vmatprep.subr.mxu0 0.0
    %258 = vmatpush1.msra.mxu0 %v103
    %259 = vmatprep.subr.mxu0 0.0
    %260 = vmatpush1.msra.mxu0 %v104
    %261 = vmatprep.subr.mxu0 0.0
    %262 = vmatpush1.msra.mxu0 %v105
    %263 = vmatprep.subr.mxu0 0.0
    %264 = vmatpush1.msra.mxu0 %v106
    %265 = vmatprep.subr.mxu0 0.0
    %266 = vmatpush1.msra.mxu0 %v107
    %267 = vmatprep.subr.mxu0 0.0
    %268 = vmatpush1.msra.mxu0 %v108
    %269 = vmatprep.subr.mxu0 0.0
    %270 = vmatpush1.msra.mxu0 %v109
    %271 = vmatprep.subr.mxu0 0.0
    %272 = vmatpush1.msra.mxu0 %v110
    %273 = vmatprep.subr.mxu0 0.0
    %274 = vmatpush1.msra.mxu0 %v111
    %275 = vmatprep.subr.mxu0 0.0
    %276 = vmatpush1.msra.mxu0 %v112
    %277 = vmatprep.subr.mxu0 0.0
    %278 = vmatpush1.msra.mxu0 %v113
    %279 = vmatprep.subr.mxu0 0.0
    %280 = vmatpush1.msra.mxu0 %v114
    %281 = vmatprep.subr.mxu0 0.0
    %282 = vmatpush1.msra.mxu0 %v115
    %283 = vmatprep.subr.mxu0 0.0
    %284 = vmatpush1.msra.mxu0 %v116
    %285 = vmatprep.subr.mxu0 0.0
    %286 = vmatpush1.msra.mxu0 %v117
    %287 = vmatprep.subr.mxu0 0.0
    %288 = vmatpush1.msra.mxu0 %v118
    %289 = vmatprep.subr.mxu0 0.0
    %290 = vmatpush1.msra.mxu0 %v119
    %291 = vmatprep.subr.mxu0 0.0
    %292 = vmatpush1.msra.mxu0 %v120
    %293 = vmatprep.subr.mxu0 0.0
    %294 = vmatpush1.msra.mxu0 %v121
    %295 = vmatprep.subr.mxu0 0.0
    %296 = vmatpush1.msra.mxu0 %v122
    %297 = vmatprep.subr.mxu0 0.0
    %298 = vmatpush1.msra.mxu0 %v123
    %299 = vmatprep.subr.mxu0 0.0
    %300 = vmatpush1.msra.mxu0 %v124
    %301 = vmatprep.subr.mxu0 0.0
    %302 = vmatpush1.msra.mxu0 %v125
    %303 = vmatprep.subr.mxu0 0.0
    %304 = vmatpush1.msra.mxu0 %v126
    %305 = vmatprep.mubr.f32.mxu0 %v54
    %306 = vmatmul.mubr.f32.gmra.mrb[0].mxu0 %v53
    %v307 = vpop.f32.mrb[0].mxu0
    %v308 = vadd.f32 %v233, %v307
    %v309 = vpop.f32.mrb[0].mxu0
    %310 = vmatprep.mubr.f32.mxu0 %v60
    %311 = vmatmul.mubr.f32.gmra.mrb[0].mxu0 %v59
    %v312 = vpop.f32.mrb[0].mxu0
    %v313 = vadd.f32 %v238, %v312
    %v314 = vpop.f32.mrb[0].mxu0
    %315 = vdwg.mxu0
    %316 = vmatprep.subr.mxu0 0.0
    %317 = vmatpush1.msra.mxu0 %v127
    %318 = vmatprep.subr.mxu0 0.0
    %319 = vmatpush1.msra.mxu0 %v128
    %320 = vmatprep.subr.mxu0 0.0
    %321 = vmatpush1.msra.mxu0 %v129
    %322 = vmatprep.subr.mxu0 0.0
    %323 = vmatpush1.msra.mxu0 %v130
    %324 = vmatprep.subr.mxu0 0.0
    %325 = vmatpush1.msra.mxu0 %v131
    %326 = vmatprep.subr.mxu0 0.0
    %327 = vmatpush1.msra.mxu0 %v132
    %328 = vmatprep.subr.mxu0 0.0
    %329 = vmatpush1.msra.mxu0 %v133
    %330 = vmatprep.subr.mxu0 0.0
    %331 = vmatpush1.msra.mxu0 %v134
    %332 = vmatprep.subr.mxu0 0.0
    %333 = vmatpush1.msra.mxu0 %v135
    %334 = vmatprep.subr.mxu0 0.0
    %335 = vmatpush1.msra.mxu0 %v136
    %336 = vmatprep.subr.mxu0 0.0
    %337 = vmatpush1.msra.mxu0 %v137
    %338 = vmatprep.subr.mxu0 0.0
    %339 = vmatpush1.msra.mxu0 %v138
    %340 = vmatprep.subr.mxu0 0.0
    %341 = vmatpush1.msra.mxu0 %v139
    %342 = vmatprep.subr.mxu0 0.0
    %343 = vmatpush1.msra.mxu0 %v140
    %344 = vmatprep.subr.mxu0 0.0
    %345 = vmatpush1.msra.mxu0 %v141
    %346 = vmatprep.subr.mxu0 0.0
    %347 = vmatpush1.msra.mxu0 %v142
    %348 = vmatprep.subr.mxu0 0.0
    %349 = vmatpush1.msra.mxu0 %v143
    %350 = vmatprep.subr.mxu0 0.0
    %351 = vmatpush1.msra.mxu0 %v144
    %352 = vmatprep.subr.mxu0 0.0
    %353 = vmatpush1.msra.mxu0 %v145
    %354 = vmatprep.subr.mxu0 0.0
    %355 = vmatpush1.msra.mxu0 %v146
    %356 = vmatprep.subr.mxu0 0.0
    %357 = vmatpush1.msra.mxu0 %v147
    %358 = vmatprep.subr.mxu0 0.0
    %359 = vmatpush1.msra.mxu0 %v148
    %360 = vmatprep.subr.mxu0 0.0
    %361 = vmatpush1.msra.mxu0 %v149
    %362 = vmatprep.subr.mxu0 0.0
    %363 = vmatpush1.msra.mxu0 %v150
    %364 = vmatprep.subr.mxu0 0.0
    %365 = vmatpush1.msra.mxu0 %v151
    %366 = vmatprep.subr.mxu0 0.0
    %367 = vmatpush1.msra.mxu0 %v152
    %368 = vmatprep.subr.mxu0 0.0
    %369 = vmatpush1.msra.mxu0 %v153
    %370 = vmatprep.subr.mxu0 0.0
    %371 = vmatpush1.msra.mxu0 %v154
    %372 = vmatprep.subr.mxu0 0.0
    %373 = vmatpush1.msra.mxu0 %v155
    %374 = vmatprep.subr.mxu0 0.0
    %375 = vmatpush1.msra.mxu0 %v156
    %376 = vmatprep.subr.mxu0 0.0
    %377 = vmatpush1.msra.mxu0 %v157
    %378 = vmatprep.subr.mxu0 0.0
    %379 = vmatpush1.msra.mxu0 %v158
    %380 = vmatprep.mubr.f32.mxu0 %v56
    %381 = vmatmul.mubr.f32.gmra.mrb[0].mxu0 %v55
    %v382 = vpop.f32.mrb[0].mxu0
    %v383 = vadd.f32 %v308, %v382
    %v384 = vpop.f32.mrb[0].mxu0
    %385 = vmatprep.mubr.f32.mxu0 %v62
    %386 = vmatmul.mubr.f32.gmra.mrb[0].mxu0 %v61
    %v387 = vpop.f32.mrb[0].mxu0
    %v388 = vadd.f32 %v313, %v387
    %v389 = vpop.f32.mrb[0].mxu0
    %390 = vdwg.mxu0
    %v391 = vld [vmem:[%s2] sm:$0xff]
    %v392 = vld [vmem:[%s2 + $0x8] sm:$0xff]
    %v393 = vld [vmem:[%s2 + $0x10] sm:$0xff]
    %v394 = vld [vmem:[%s2 + $0x18] sm:$0xff]
    %vm395 = vcmask 261120
    %v397 = vsel %vm395, 0.0, 0
    %399 = vmatprep.subr.mxu0 0.0
    %400 = vmatpush1.msra.mxu0 %v391
    %401 = vmatprep.subr.mxu0 0.0
    %402 = vmatpush1.msra.mxu0 %v392
    %403 = vmatprep.subr.mxu0 0.0
    %404 = vmatpush1.msra.mxu0 %v393
    %405 = vmatprep.subr.mxu0 0.0
    %406 = vmatpush1.msra.mxu0 %v394
    %407 = vmatprep.subr.mxu0 0.0
    %408 = vmatpush1.msra.mxu0 0.0
    %409 = vmatprep.subr.mxu0 0.0
    %410 = vmatpush1.msra.mxu0 0.0
    %411 = vmatprep.subr.mxu0 0.0
    %412 = vmatpush1.msra.mxu0 0.0
    %413 = vmatprep.subr.mxu0 0.0
    %414 = vmatpush1.msra.mxu0 0.0
    %415 = vmatprep.subr.mxu0 0.0
    %416 = vmatpush1.msra.mxu0 0.0
    %417 = vmatprep.subr.mxu0 0.0
    %418 = vmatpush1.msra.mxu0 0.0
    %419 = vmatprep.subr.mxu0 0.0
    %420 = vmatpush1.msra.mxu0 0.0
    %421 = vmatprep.subr.mxu0 0.0
    %422 = vmatpush1.msra.mxu0 0.0
    %423 = vmatprep.subr.mxu0 0.0
    %424 = vmatpush1.msra.mxu0 0.0
    %425 = vmatprep.subr.mxu0 0.0
    %426 = vmatpush1.msra.mxu0 0.0
    %427 = vmatprep.subr.mxu0 0.0
    %428 = vmatpush1.msra.mxu0 0.0
    %429 = vmatprep.subr.mxu0 0.0
    %430 = vmatpush1.msra.mxu0 0.0
    %431 = vmatprep.subr.mxu0 0.0
    %432 = vmatpush1.msra.mxu0 0.0
    %433 = vmatprep.subr.mxu0 0.0
    %434 = vmatpush1.msra.mxu0 0.0
    %435 = vmatprep.subr.mxu0 0.0
    %436 = vmatpush1.msra.mxu0 0.0
    %437 = vmatprep.subr.mxu0 0.0
    %438 = vmatpush1.msra.mxu0 0.0
    %439 = vmatprep.subr.mxu0 0.0
    %440 = vmatpush1.msra.mxu0 0.0
    %441 = vmatprep.subr.mxu0 0.0
    %442 = vmatpush1.msra.mxu0 0.0
    %443 = vmatprep.subr.mxu0 0.0
    %444 = vmatpush1.msra.mxu0 0.0
    %445 = vmatprep.subr.mxu0 0.0
    %446 = vmatpush1.msra.mxu0 0.0
    %447 = vmatprep.subr.mxu0 0.0
    %448 = vmatpush1.msra.mxu0 0.0
    %449 = vmatprep.subr.mxu0 0.0
    %450 = vmatpush1.msra.mxu0 0.0
    %451 = vmatprep.subr.mxu0 0.0
    %452 = vmatpush1.msra.mxu0 0.0
    %453 = vmatprep.subr.mxu0 0.0
    %454 = vmatpush1.msra.mxu0 0.0
    %455 = vmatprep.subr.mxu0 0.0
    %456 = vmatpush1.msra.mxu0 0.0
    %457 = vmatprep.subr.mxu0 0.0
    %458 = vmatpush1.msra.mxu0 0.0
    %459 = vmatprep.subr.mxu0 0.0
    %460 = vmatpush1.msra.mxu0 0.0
    %461 = vmatprep.subr.mxu0 0.0
    %462 = vmatpush1.msra.mxu0 0.0
    %463 = vmatprep.mubr.f32.mxu0 0.0
    %464 = vmatmul.mubr.f32.gmra.mrb[0].mxu0 %v397
    %v465 = vpop.f32.mrb[0].mxu0
    %v466 = vadd.f32 0.0, %v465
    %v467 = vpop.f32.mrb[0].mxu0
    %468 = vdwg.mxu0
    %v469 = vadd.f32 %v383, %v466
    %v470 = vxor.u32 %v469, 2147483648
    %v471 = vmul.f32 %v470, 1.442695
    %v472 = vpow.pop %v471
    %v473 = vadd.f32 %v472, 1.0
    %v474 = vrcp.pop %v473
    %v475 = vmul.f32 1.0, %v474
    %v476 = vtanh.pop %v469
    %v477 = vmul.f32 %v475, 0.0
    %479 = vrot.lane.b32.xlu0 %v476, 64
    %v480 = vpop.permute.xlu0 %479
    %v482 = vmul.f32 %v475, %v480
    %484 = vrot.lane.b32.xlu0 %v482, 32
    %v485 = vpop.permute.xlu0 %484
    %v487 = vadd.f32 %v477, %v485
    %v488 = vtanh.pop %v487
    %490 = vrot.lane.b32.xlu0 %v488, 64
    %v491 = vpop.permute.xlu0 %490
    %v493 = vmul.f32 %v475, %v491
    %495 = vrot.lane.b32.xlu0 %v493, 32
    %v496 = vpop.permute.xlu0 %495
    %v497 = vsel %vm395, %v496, 0
    %499 = vmatprep.subr.mxu0 0.0
    %500 = vmatpush1.msra.mxu0 %v391
    %501 = vmatprep.subr.mxu0 0.0
    %502 = vmatpush1.msra.mxu0 %v392
    %503 = vmatprep.subr.mxu0 0.0
    %504 = vmatpush1.msra.mxu0 %v393
    %505 = vmatprep.subr.mxu0 0.0
    %506 = vmatpush1.msra.mxu0 %v394
    %507 = vmatprep.subr.mxu0 0.0
    %508 = vmatpush1.msra.mxu0 0.0
    %509 = vmatprep.subr.mxu0 0.0
    %510 = vmatpush1.msra.mxu0 0.0
    %511 = vmatprep.subr.mxu0 0.0
    %512 = vmatpush1.msra.mxu0 0.0
    %513 = vmatprep.subr.mxu0 0.0
    %514 = vmatpush1.msra.mxu0 0.0
    %515 = vmatprep.subr.mxu0 0.0
    %516 = vmatpush1.msra.mxu0 0.0
    %517 = vmatprep.subr.mxu0 0.0
    %518 = vmatpush1.msra.mxu0 0.0
    %519 = vmatprep.subr.mxu0 0.0
    %520 = vmatpush1.msra.mxu0 0.0
    %521 = vmatprep.subr.mxu0 0.0
    %522 = vmatpush1.msra.mxu0 0.0
    %523 = vmatprep.subr.mxu0 0.0
    %524 = vmatpush1.msra.mxu0 0.0
    %525 = vmatprep.subr.mxu0 0.0
    %526 = vmatpush1.msra.mxu0 0.0
    %527 = vmatprep.subr.mxu0 0.0
    %528 = vmatpush1.msra.mxu0 0.0
    %529 = vmatprep.subr.mxu0 0.0
    %530 = vmatpush1.msra.mxu0 0.0
    %531 = vmatprep.subr.mxu0 0.0
    %532 = vmatpush1.msra.mxu0 0.0
    %533 = vmatprep.subr.mxu0 0.0
    %534 = vmatpush1.msra.mxu0 0.0
    %535 = vmatprep.subr.mxu0 0.0
    %536 = vmatpush1.msra.mxu0 0.0
    %537 = vmatprep.subr.mxu0 0.0
    %538 = vmatpush1.msra.mxu0 0.0
    %539 = vmatprep.subr.mxu0 0.0
    %540 = vmatpush1.msra.mxu0 0.0
    %541 = vmatprep.subr.mxu0 0.0
    %542 = vmatpush1.msra.mxu0 0.0
    %543 = vmatprep.subr.mxu0 0.0
    %544 = vmatpush1.msra.mxu0 0.0
    %545 = vmatprep.subr.mxu0 0.0
    %546 = vmatpush1.msra.mxu0 0.0
    %547 = vmatprep.subr.mxu0 0.0
    %548 = vmatpush1.msra.mxu0 0.0
    %549 = vmatprep.subr.mxu0 0.0
    %550 = vmatpush1.msra.mxu0 0.0
    %551 = vmatprep.subr.mxu0 0.0
    %552 = vmatpush1.msra.mxu0 0.0
    %553 = vmatprep.subr.mxu0 0.0
    %554 = vmatpush1.msra.mxu0 0.0
    %555 = vmatprep.subr.mxu0 0.0
    %556 = vmatpush1.msra.mxu0 0.0
    %557 = vmatprep.subr.mxu0 0.0
    %558 = vmatpush1.msra.mxu0 0.0
    %559 = vmatprep.subr.mxu0 0.0
    %560 = vmatpush1.msra.mxu0 0.0
    %561 = vmatprep.subr.mxu0 0.0
    %562 = vmatpush1.msra.mxu0 0.0
    %563 = vmatprep.mubr.f32.mxu0 0.0
    %564 = vmatmul.mubr.f32.gmra.mrb[0].mxu0 %v497
    %v565 = vpop.f32.mrb[0].mxu0
    %v566 = vadd.f32 0.0, %v565
    %v567 = vpop.f32.mrb[0].mxu0
    %568 = vdwg.mxu0
    %v570 = vrot.slane %v566, 6
    %v572 = vadd.f32 %v383, %v570
    %v573 = vxor.u32 %v572, 2147483648
    %v574 = vmul.f32 %v573, 1.442695
    %v575 = vpow.pop %v574
    %v576 = vadd.f32 %v575, 1.0
    %v577 = vrcp.pop %v576
    %v578 = vmul.f32 1.0, %v577
    %v579 = vtanh.pop %v572
    %v581 = vrot.slane %v487, 6
    %v583 = vmul.f32 %v578, %v581
    %585 = vrot.lane.b32.xlu0 %v579, 64
    %v586 = vpop.permute.xlu0 %585
    %v588 = vmul.f32 %v578, %v586
    %590 = vrot.lane.b32.xlu0 %v588, 32
    %v591 = vpop.permute.xlu0 %590
    %v593 = vadd.f32 %v583, %v591
    %v594 = vtanh.pop %v593
    %596 = vrot.lane.b32.xlu0 %v594, 64
    %v597 = vpop.permute.xlu0 %596
    %v599 = vmul.f32 %v578, %v597
    %v601 = vrot.slane %v599, 2
    %602 = vrot.lane.b32.xlu0 %v601, 32
    %v603 = vpop.permute.xlu0 %602
    %v604 = vsel %vm395, %v603, 0
    %606 = vmatprep.subr.mxu0 0.0
    %607 = vmatpush1.msra.mxu0 %v391
    %608 = vmatprep.subr.mxu0 0.0
    %609 = vmatpush1.msra.mxu0 %v392
    %610 = vmatprep.subr.mxu0 0.0
    %611 = vmatpush1.msra.mxu0 %v393
    %612 = vmatprep.subr.mxu0 0.0
    %613 = vmatpush1.msra.mxu0 %v394
    %614 = vmatprep.subr.mxu0 0.0
    %615 = vmatpush1.msra.mxu0 0.0
    %616 = vmatprep.subr.mxu0 0.0
    %617 = vmatpush1.msra.mxu0 0.0
    %618 = vmatprep.subr.mxu0 0.0
    %619 = vmatpush1.msra.mxu0 0.0
    %620 = vmatprep.subr.mxu0 0.0
    %621 = vmatpush1.msra.mxu0 0.0
    %622 = vmatprep.subr.mxu0 0.0
    %623 = vmatpush1.msra.mxu0 0.0
    %624 = vmatprep.subr.mxu0 0.0
    %625 = vmatpush1.msra.mxu0 0.0
    %626 = vmatprep.subr.mxu0 0.0
    %627 = vmatpush1.msra.mxu0 0.0
    %628 = vmatprep.subr.mxu0 0.0
    %629 = vmatpush1.msra.mxu0 0.0
    %630 = vmatprep.subr.mxu0 0.0
    %631 = vmatpush1.msra.mxu0 0.0
    %632 = vmatprep.subr.mxu0 0.0
    %633 = vmatpush1.msra.mxu0 0.0
    %634 = vmatprep.subr.mxu0 0.0
    %635 = vmatpush1.msra.mxu0 0.0
    %636 = vmatprep.subr.mxu0 0.0
    %637 = vmatpush1.msra.mxu0 0.0
    %638 = vmatprep.subr.mxu0 0.0
    %639 = vmatpush1.msra.mxu0 0.0
    %640 = vmatprep.subr.mxu0 0.0
    %641 = vmatpush1.msra.mxu0 0.0
    %642 = vmatprep.subr.mxu0 0.0
    %643 = vmatpush1.msra.mxu0 0.0
    %644 = vmatprep.subr.mxu0 0.0
    %645 = vmatpush1.msra.mxu0 0.0
    %646 = vmatprep.subr.mxu0 0.0
    %647 = vmatpush1.msra.mxu0 0.0
    %648 = vmatprep.subr.mxu0 0.0
    %649 = vmatpush1.msra.mxu0 0.0
    %650 = vmatprep.subr.mxu0 0.0
    %651 = vmatpush1.msra.mxu0 0.0
    %652 = vmatprep.subr.mxu0 0.0
    %653 = vmatpush1.msra.mxu0 0.0
    %654 = vmatprep.subr.mxu0 0.0
    %655 = vmatpush1.msra.mxu0 0.0
    %656 = vmatprep.subr.mxu0 0.0
    %657 = vmatpush1.msra.mxu0 0.0
    %658 = vmatprep.subr.mxu0 0.0
    %659 = vmatpush1.msra.mxu0 0.0
    %660 = vmatprep.subr.mxu0 0.0
    %661 = vmatpush1.msra.mxu0 0.0
    %662 = vmatprep.subr.mxu0 0.0
    %663 = vmatpush1.msra.mxu0 0.0
    %664 = vmatprep.subr.mxu0 0.0
    %665 = vmatpush1.msra.mxu0 0.0
    %666 = vmatprep.subr.mxu0 0.0
    %667 = vmatpush1.msra.mxu0 0.0
    %668 = vmatprep.subr.mxu0 0.0
    %669 = vmatpush1.msra.mxu0 0.0
    %670 = vmatprep.mubr.f32.mxu0 0.0
    %671 = vmatmul.mubr.f32.gmra.mrb[0].mxu0 %v604
    %v672 = vpop.f32.mrb[0].mxu0
    %v673 = vadd.f32 0.0, %v672
    %v674 = vpop.f32.mrb[0].mxu0
    %675 = vdwg.mxu0
    %v677 = vrot.slane %v673, 4
    %v679 = vadd.f32 %v383, %v677
    %v680 = vxor.u32 %v679, 2147483648
    %v681 = vmul.f32 %v680, 1.442695
    %v682 = vpow.pop %v681
    %v683 = vadd.f32 %v682, 1.0
    %v684 = vrcp.pop %v683
    %v685 = vmul.f32 1.0, %v684
    %v686 = vtanh.pop %v679
    %v688 = vrot.slane %v593, 6
    %v690 = vmul.f32 %v685, %v688
    %692 = vrot.lane.b32.xlu0 %v686, 64
    %v693 = vpop.permute.xlu0 %692
    %v695 = vmul.f32 %v685, %v693
    %697 = vrot.lane.b32.xlu0 %v695, 32
    %v698 = vpop.permute.xlu0 %697
    %v700 = vadd.f32 %v690, %v698
    %v701 = vtanh.pop %v700
    %703 = vrot.lane.b32.xlu0 %v701, 64
    %v704 = vpop.permute.xlu0 %703
    %v706 = vmul.f32 %v685, %v704
    %v708 = vrot.slane %v706, 4
    %709 = vrot.lane.b32.xlu0 %v708, 32
    %v710 = vpop.permute.xlu0 %709
    %v711 = vsel %vm395, %v710, 0
    %713 = vmatprep.subr.mxu0 0.0
    %714 = vmatpush1.msra.mxu0 %v391
    %715 = vmatprep.subr.mxu0 0.0
    %716 = vmatpush1.msra.mxu0 %v392
    %717 = vmatprep.subr.mxu0 0.0
    %718 = vmatpush1.msra.mxu0 %v393
    %719 = vmatprep.subr.mxu0 0.0
    %720 = vmatpush1.msra.mxu0 %v394
    %721 = vmatprep.subr.mxu0 0.0
    %722 = vmatpush1.msra.mxu0 0.0
    %723 = vmatprep.subr.mxu0 0.0
    %724 = vmatpush1.msra.mxu0 0.0
    %725 = vmatprep.subr.mxu0 0.0
    %726 = vmatpush1.msra.mxu0 0.0
    %727 = vmatprep.subr.mxu0 0.0
    %728 = vmatpush1.msra.mxu0 0.0
    %729 = vmatprep.subr.mxu0 0.0
    %730 = vmatpush1.msra.mxu0 0.0
    %731 = vmatprep.subr.mxu0 0.0
    %732 = vmatpush1.msra.mxu0 0.0
    %733 = vmatprep.subr.mxu0 0.0
    %734 = vmatpush1.msra.mxu0 0.0
    %735 = vmatprep.subr.mxu0 0.0
    %736 = vmatpush1.msra.mxu0 0.0
    %737 = vmatprep.subr.mxu0 0.0
    %738 = vmatpush1.msra.mxu0 0.0
    %739 = vmatprep.subr.mxu0 0.0
    %740 = vmatpush1.msra.mxu0 0.0
    %741 = vmatprep.subr.mxu0 0.0
    %742 = vmatpush1.msra.mxu0 0.0
    %743 = vmatprep.subr.mxu0 0.0
    %744 = vmatpush1.msra.mxu0 0.0
    %745 = vmatprep.subr.mxu0 0.0
    %746 = vmatpush1.msra.mxu0 0.0
    %747 = vmatprep.subr.mxu0 0.0
    %748 = vmatpush1.msra.mxu0 0.0
    %749 = vmatprep.subr.mxu0 0.0
    %750 = vmatpush1.msra.mxu0 0.0
    %751 = vmatprep.subr.mxu0 0.0
    %752 = vmatpush1.msra.mxu0 0.0
    %753 = vmatprep.subr.mxu0 0.0
    %754 = vmatpush1.msra.mxu0 0.0
    %755 = vmatprep.subr.mxu0 0.0
    %756 = vmatpush1.msra.mxu0 0.0
    %757 = vmatprep.subr.mxu0 0.0
    %758 = vmatpush1.msra.mxu0 0.0
    %759 = vmatprep.subr.mxu0 0.0
    %760 = vmatpush1.msra.mxu0 0.0
    %761 = vmatprep.subr.mxu0 0.0
    %762 = vmatpush1.msra.mxu0 0.0
    %763 = vmatprep.subr.mxu0 0.0
    %764 = vmatpush1.msra.mxu0 0.0
    %765 = vmatprep.subr.mxu0 0.0
    %766 = vmatpush1.msra.mxu0 0.0
    %767 = vmatprep.subr.mxu0 0.0
    %768 = vmatpush1.msra.mxu0 0.0
    %769 = vmatprep.subr.mxu0 0.0
    %770 = vmatpush1.msra.mxu0 0.0
    %771 = vmatprep.subr.mxu0 0.0
    %772 = vmatpush1.msra.mxu0 0.0
    %773 = vmatprep.subr.mxu0 0.0
    %774 = vmatpush1.msra.mxu0 0.0
    %775 = vmatprep.subr.mxu0 0.0
    %776 = vmatpush1.msra.mxu0 0.0
    %777 = vmatprep.mubr.f32.mxu0 0.0
    %778 = vmatmul.mubr.f32.gmra.mrb[0].mxu0 %v711
    %v779 = vpop.f32.mrb[0].mxu0
    %v780 = vadd.f32 0.0, %v779
    %v781 = vpop.f32.mrb[0].mxu0
    %782 = vdwg.mxu0
    %v784 = vrot.slane %v780, 2
    %v786 = vadd.f32 %v383, %v784
    %v787 = vxor.u32 %v786, 2147483648
    %v788 = vmul.f32 %v787, 1.442695
    %v789 = vpow.pop %v788
    %v790 = vadd.f32 %v789, 1.0
    %v791 = vrcp.pop %v790
    %v792 = vmul.f32 1.0, %v791
    %v793 = vtanh.pop %v786
    %v795 = vrot.slane %v700, 6
    %v797 = vmul.f32 %v792, %v795
    %799 = vrot.lane.b32.xlu0 %v793, 64
    %v800 = vpop.permute.xlu0 %799
    %v802 = vmul.f32 %v792, %v800
    %804 = vrot.lane.b32.xlu0 %v802, 32
    %v805 = vpop.permute.xlu0 %804
    %v807 = vadd.f32 %v797, %v805
    %v808 = vtanh.pop %v807
    %810 = vrot.lane.b32.xlu0 %v808, 64
    %v811 = vpop.permute.xlu0 %810
    %v813 = vmul.f32 %v792, %v811
    %v815 = vrot.slane %v813, 6
    %816 = vrot.lane.b32.xlu0 %v815, 32
    %v817 = vpop.permute.xlu0 %816
    %v818 = vsel %vm395, %v817, 0
    %820 = vmatprep.subr.mxu0 0.0
    %821 = vmatpush1.msra.mxu0 %v391
    %822 = vmatprep.subr.mxu0 0.0
    %823 = vmatpush1.msra.mxu0 %v392
    %824 = vmatprep.subr.mxu0 0.0
    %825 = vmatpush1.msra.mxu0 %v393
    %826 = vmatprep.subr.mxu0 0.0
    %827 = vmatpush1.msra.mxu0 %v394
    %828 = vmatprep.subr.mxu0 0.0
    %829 = vmatpush1.msra.mxu0 0.0
    %830 = vmatprep.subr.mxu0 0.0
    %831 = vmatpush1.msra.mxu0 0.0
    %832 = vmatprep.subr.mxu0 0.0
    %833 = vmatpush1.msra.mxu0 0.0
    %834 = vmatprep.subr.mxu0 0.0
    %835 = vmatpush1.msra.mxu0 0.0
    %836 = vmatprep.subr.mxu0 0.0
    %837 = vmatpush1.msra.mxu0 0.0
    %838 = vmatprep.subr.mxu0 0.0
    %839 = vmatpush1.msra.mxu0 0.0
    %840 = vmatprep.subr.mxu0 0.0
    %841 = vmatpush1.msra.mxu0 0.0
    %842 = vmatprep.subr.mxu0 0.0
    %843 = vmatpush1.msra.mxu0 0.0
    %844 = vmatprep.subr.mxu0 0.0
    %845 = vmatpush1.msra.mxu0 0.0
    %846 = vmatprep.subr.mxu0 0.0
    %847 = vmatpush1.msra.mxu0 0.0
    %848 = vmatprep.subr.mxu0 0.0
    %849 = vmatpush1.msra.mxu0 0.0
    %850 = vmatprep.subr.mxu0 0.0
    %851 = vmatpush1.msra.mxu0 0.0
    %852 = vmatprep.subr.mxu0 0.0
    %853 = vmatpush1.msra.mxu0 0.0
    %854 = vmatprep.subr.mxu0 0.0
    %855 = vmatpush1.msra.mxu0 0.0
    %856 = vmatprep.subr.mxu0 0.0
    %857 = vmatpush1.msra.mxu0 0.0
    %858 = vmatprep.subr.mxu0 0.0
    %859 = vmatpush1.msra.mxu0 0.0
    %860 = vmatprep.subr.mxu0 0.0
    %861 = vmatpush1.msra.mxu0 0.0
    %862 = vmatprep.subr.mxu0 0.0
    %863 = vmatpush1.msra.mxu0 0.0
    %864 = vmatprep.subr.mxu0 0.0
    %865 = vmatpush1.msra.mxu0 0.0
    %866 = vmatprep.subr.mxu0 0.0
    %867 = vmatpush1.msra.mxu0 0.0
    %868 = vmatprep.subr.mxu0 0.0
    %869 = vmatpush1.msra.mxu0 0.0
    %870 = vmatprep.subr.mxu0 0.0
    %871 = vmatpush1.msra.mxu0 0.0
    %872 = vmatprep.subr.mxu0 0.0
    %873 = vmatpush1.msra.mxu0 0.0
    %874 = vmatprep.subr.mxu0 0.0
    %875 = vmatpush1.msra.mxu0 0.0
    %876 = vmatprep.subr.mxu0 0.0
    %877 = vmatpush1.msra.mxu0 0.0
    %878 = vmatprep.subr.mxu0 0.0
    %879 = vmatpush1.msra.mxu0 0.0
    %880 = vmatprep.subr.mxu0 0.0
    %881 = vmatpush1.msra.mxu0 0.0
    %882 = vmatprep.subr.mxu0 0.0
    %883 = vmatpush1.msra.mxu0 0.0
    %884 = vmatprep.mubr.f32.mxu0 0.0
    %885 = vmatmul.mubr.f32.gmra.mrb[0].mxu0 %v818
    %v886 = vpop.f32.mrb[0].mxu0
    %v887 = vadd.f32 0.0, %v886
    %v888 = vpop.f32.mrb[0].mxu0
    %889 = vdwg.mxu0
    %v890 = vadd.f32 %v388, %v887
    %v891 = vxor.u32 %v890, 2147483648
    %v892 = vmul.f32 %v891, 1.442695
    %v893 = vpow.pop %v892
    %v894 = vadd.f32 %v893, 1.0
    %v895 = vrcp.pop %v894
    %v896 = vmul.f32 1.0, %v895
    %v897 = vtanh.pop %v890
    %v899 = vrot.slane %v807, 6
    %v901 = vmul.f32 %v896, %v899
    %903 = vrot.lane.b32.xlu0 %v897, 64
    %v904 = vpop.permute.xlu0 %903
    %v906 = vmul.f32 %v896, %v904
    %908 = vrot.lane.b32.xlu0 %v906, 32
    %v909 = vpop.permute.xlu0 %908
    %v911 = vadd.f32 %v901, %v909
    %v912 = vtanh.pop %v911
    %914 = vrot.lane.b32.xlu0 %v912, 64
    %v915 = vpop.permute.xlu0 %914
    %v917 = vmul.f32 %v896, %v915
    %919 = vrot.lane.b32.xlu0 %v917, 32
    %v920 = vpop.permute.xlu0 %919
    %v921 = vsel %vm395, %v920, 0
    %923 = vmatprep.subr.mxu0 0.0
    %924 = vmatpush1.msra.mxu0 %v391
    %925 = vmatprep.subr.mxu0 0.0
    %926 = vmatpush1.msra.mxu0 %v392
    %927 = vmatprep.subr.mxu0 0.0
    %928 = vmatpush1.msra.mxu0 %v393
    %929 = vmatprep.subr.mxu0 0.0
    %930 = vmatpush1.msra.mxu0 %v394
    %931 = vmatprep.subr.mxu0 0.0
    %932 = vmatpush1.msra.mxu0 0.0
    %933 = vmatprep.subr.mxu0 0.0
    %934 = vmatpush1.msra.mxu0 0.0
    %935 = vmatprep.subr.mxu0 0.0
    %936 = vmatpush1.msra.mxu0 0.0
    %937 = vmatprep.subr.mxu0 0.0
    %938 = vmatpush1.msra.mxu0 0.0
    %939 = vmatprep.subr.mxu0 0.0
    %940 = vmatpush1.msra.mxu0 0.0
    %941 = vmatprep.subr.mxu0 0.0
    %942 = vmatpush1.msra.mxu0 0.0
    %943 = vmatprep.subr.mxu0 0.0
    %944 = vmatpush1.msra.mxu0 0.0
    %945 = vmatprep.subr.mxu0 0.0
    %946 = vmatpush1.msra.mxu0 0.0
    %947 = vmatprep.subr.mxu0 0.0
    %948 = vmatpush1.msra.mxu0 0.0
    %949 = vmatprep.subr.mxu0 0.0
    %950 = vmatpush1.msra.mxu0 0.0
    %951 = vmatprep.subr.mxu0 0.0
    %952 = vmatpush1.msra.mxu0 0.0
    %953 = vmatprep.subr.mxu0 0.0
    %954 = vmatpush1.msra.mxu0 0.0
    %955 = vmatprep.subr.mxu0 0.0
    %956 = vmatpush1.msra.mxu0 0.0
    %957 = vmatprep.subr.mxu0 0.0
    %958 = vmatpush1.msra.mxu0 0.0
    %959 = vmatprep.subr.mxu0 0.0
    %960 = vmatpush1.msra.mxu0 0.0
    %961 = vmatprep.subr.mxu0 0.0
    %962 = vmatpush1.msra.mxu0 0.0
    %963 = vmatprep.subr.mxu0 0.0
    %964 = vmatpush1.msra.mxu0 0.0
    %965 = vmatprep.subr.mxu0 0.0
    %966 = vmatpush1.msra.mxu0 0.0
    %967 = vmatprep.subr.mxu0 0.0
    %968 = vmatpush1.msra.mxu0 0.0
    %969 = vmatprep.subr.mxu0 0.0
    %970 = vmatpush1.msra.mxu0 0.0
    %971 = vmatprep.subr.mxu0 0.0
    %972 = vmatpush1.msra.mxu0 0.0
    %973 = vmatprep.subr.mxu0 0.0
    %974 = vmatpush1.msra.mxu0 0.0
    %975 = vmatprep.subr.mxu0 0.0
    %976 = vmatpush1.msra.mxu0 0.0
    %977 = vmatprep.subr.mxu0 0.0
    %978 = vmatpush1.msra.mxu0 0.0
    %979 = vmatprep.subr.mxu0 0.0
    %980 = vmatpush1.msra.mxu0 0.0
    %981 = vmatprep.subr.mxu0 0.0
    %982 = vmatpush1.msra.mxu0 0.0
    %983 = vmatprep.subr.mxu0 0.0
    %984 = vmatpush1.msra.mxu0 0.0
    %985 = vmatprep.subr.mxu0 0.0
    %986 = vmatpush1.msra.mxu0 0.0
    %987 = vmatprep.mubr.f32.mxu0 0.0
    %988 = vmatmul.mubr.f32.gmra.mrb[0].mxu0 %v921
    %v989 = vpop.f32.mrb[0].mxu0
    %v990 = vadd.f32 0.0, %v989
    %v991 = vpop.f32.mrb[0].mxu0
    %992 = vdwg.mxu0
    %v994 = vrot.slane %v990, 6
    %v996 = vadd.f32 %v388, %v994
    %v997 = vxor.u32 %v996, 2147483648
    %v998 = vmul.f32 %v997, 1.442695
    %v999 = vpow.pop %v998
    %v1000 = vadd.f32 %v999, 1.0
    %v1001 = vrcp.pop %v1000
    %v1002 = vmul.f32 1.0, %v1001
    %v1003 = vtanh.pop %v996
    %v1005 = vrot.slane %v911, 6
    %v1007 = vmul.f32 %v1002, %v1005
    %1009 = vrot.lane.b32.xlu0 %v1003, 64
    %v1010 = vpop.permute.xlu0 %1009
    %v1012 = vmul.f32 %v1002, %v1010
    %1014 = vrot.lane.b32.xlu0 %v1012, 32
    %v1015 = vpop.permute.xlu0 %1014
    %v1017 = vadd.f32 %v1007, %v1015
    %v1018 = vtanh.pop %v1017
    %1020 = vrot.lane.b32.xlu0 %v1018, 64
    %v1021 = vpop.permute.xlu0 %1020
    %v1023 = vmul.f32 %v1002, %v1021
    %v1025 = vrot.slane %v1023, 2
    %1026 = vrot.lane.b32.xlu0 %v1025, 32
    %v1027 = vpop.permute.xlu0 %1026
    %v1028 = vsel %vm395, %v1027, 0
    %1030 = vmatprep.subr.mxu0 0.0
    %1031 = vmatpush1.msra.mxu0 %v391
    %1032 = vmatprep.subr.mxu0 0.0
    %1033 = vmatpush1.msra.mxu0 %v392
    %1034 = vmatprep.subr.mxu0 0.0
    %1035 = vmatpush1.msra.mxu0 %v393
    %1036 = vmatprep.subr.mxu0 0.0
    %1037 = vmatpush1.msra.mxu0 %v394
    %1038 = vmatprep.subr.mxu0 0.0
    %1039 = vmatpush1.msra.mxu0 0.0
    %1040 = vmatprep.subr.mxu0 0.0
    %1041 = vmatpush1.msra.mxu0 0.0
    %1042 = vmatprep.subr.mxu0 0.0
    %1043 = vmatpush1.msra.mxu0 0.0
    %1044 = vmatprep.subr.mxu0 0.0
    %1045 = vmatpush1.msra.mxu0 0.0
    %1046 = vmatprep.subr.mxu0 0.0
    %1047 = vmatpush1.msra.mxu0 0.0
    %1048 = vmatprep.subr.mxu0 0.0
    %1049 = vmatpush1.msra.mxu0 0.0
    %1050 = vmatprep.subr.mxu0 0.0
    %1051 = vmatpush1.msra.mxu0 0.0
    %1052 = vmatprep.subr.mxu0 0.0
    %1053 = vmatpush1.msra.mxu0 0.0
    %1054 = vmatprep.subr.mxu0 0.0
    %1055 = vmatpush1.msra.mxu0 0.0
    %1056 = vmatprep.subr.mxu0 0.0
    %1057 = vmatpush1.msra.mxu0 0.0
    %1058 = vmatprep.subr.mxu0 0.0
    %1059 = vmatpush1.msra.mxu0 0.0
    %1060 = vmatprep.subr.mxu0 0.0
    %1061 = vmatpush1.msra.mxu0 0.0
    %1062 = vmatprep.subr.mxu0 0.0
    %1063 = vmatpush1.msra.mxu0 0.0
    %1064 = vmatprep.subr.mxu0 0.0
    %1065 = vmatpush1.msra.mxu0 0.0
    %1066 = vmatprep.subr.mxu0 0.0
    %1067 = vmatpush1.msra.mxu0 0.0
    %1068 = vmatprep.subr.mxu0 0.0
    %1069 = vmatpush1.msra.mxu0 0.0
    %1070 = vmatprep.subr.mxu0 0.0
    %1071 = vmatpush1.msra.mxu0 0.0
    %1072 = vmatprep.subr.mxu0 0.0
    %1073 = vmatpush1.msra.mxu0 0.0
    %1074 = vmatprep.subr.mxu0 0.0
    %1075 = vmatpush1.msra.mxu0 0.0
    %1076 = vmatprep.subr.mxu0 0.0
    %1077 = vmatpush1.msra.mxu0 0.0
    %1078 = vmatprep.subr.mxu0 0.0
    %1079 = vmatpush1.msra.mxu0 0.0
    %1080 = vmatprep.subr.mxu0 0.0
    %1081 = vmatpush1.msra.mxu0 0.0
    %1082 = vmatprep.subr.mxu0 0.0
    %1083 = vmatpush1.msra.mxu0 0.0
    %1084 = vmatprep.subr.mxu0 0.0
    %1085 = vmatpush1.msra.mxu0 0.0
    %1086 = vmatprep.subr.mxu0 0.0
    %1087 = vmatpush1.msra.mxu0 0.0
    %1088 = vmatprep.subr.mxu0 0.0
    %1089 = vmatpush1.msra.mxu0 0.0
    %1090 = vmatprep.subr.mxu0 0.0
    %1091 = vmatpush1.msra.mxu0 0.0
    %1092 = vmatprep.subr.mxu0 0.0
    %1093 = vmatpush1.msra.mxu0 0.0
    %1094 = vmatprep.mubr.f32.mxu0 0.0
    %1095 = vmatmul.mubr.f32.gmra.mrb[0].mxu0 %v1028
    %v1096 = vpop.f32.mrb[0].mxu0
    %v1097 = vadd.f32 0.0, %v1096
    %v1098 = vpop.f32.mrb[0].mxu0
    %1099 = vdwg.mxu0
    %v1101 = vrot.slane %v1097, 4
    %v1103 = vadd.f32 %v388, %v1101
    %v1104 = vxor.u32 %v1103, 2147483648
    %v1105 = vmul.f32 %v1104, 1.442695
    %v1106 = vpow.pop %v1105
    %v1107 = vadd.f32 %v1106, 1.0
    %v1108 = vrcp.pop %v1107
    %v1109 = vmul.f32 1.0, %v1108
    %v1110 = vtanh.pop %v1103
    %v1112 = vrot.slane %v1017, 6
    %v1114 = vmul.f32 %v1109, %v1112
    %1116 = vrot.lane.b32.xlu0 %v1110, 64
    %v1117 = vpop.permute.xlu0 %1116
    %v1119 = vmul.f32 %v1109, %v1117
    %1121 = vrot.lane.b32.xlu0 %v1119, 32
    %v1122 = vpop.permute.xlu0 %1121
    %v1124 = vadd.f32 %v1114, %v1122
    %v1125 = vtanh.pop %v1124
    %1127 = vrot.lane.b32.xlu0 %v1125, 64
    %v1128 = vpop.permute.xlu0 %1127
    %v1130 = vmul.f32 %v1109, %v1128
    %v1132 = vrot.slane %v1130, 4
    %1133 = vrot.lane.b32.xlu0 %v1132, 32
    %v1134 = vpop.permute.xlu0 %1133
    %v1135 = vsel %vm395, %v1134, 0
    %1137 = vmatprep.subr.mxu0 0.0
    %1138 = vmatpush1.msra.mxu0 %v391
    %1139 = vmatprep.subr.mxu0 0.0
    %1140 = vmatpush1.msra.mxu0 %v392
    %1141 = vmatprep.subr.mxu0 0.0
    %1142 = vmatpush1.msra.mxu0 %v393
    %1143 = vmatprep.subr.mxu0 0.0
    %1144 = vmatpush1.msra.mxu0 %v394
    %1145 = vmatprep.subr.mxu0 0.0
    %1146 = vmatpush1.msra.mxu0 0.0
    %1147 = vmatprep.subr.mxu0 0.0
    %1148 = vmatpush1.msra.mxu0 0.0
    %1149 = vmatprep.subr.mxu0 0.0
    %1150 = vmatpush1.msra.mxu0 0.0
    %1151 = vmatprep.subr.mxu0 0.0
    %1152 = vmatpush1.msra.mxu0 0.0
    %1153 = vmatprep.subr.mxu0 0.0
    %1154 = vmatpush1.msra.mxu0 0.0
    %1155 = vmatprep.subr.mxu0 0.0
    %1156 = vmatpush1.msra.mxu0 0.0
    %1157 = vmatprep.subr.mxu0 0.0
    %1158 = vmatpush1.msra.mxu0 0.0
    %1159 = vmatprep.subr.mxu0 0.0
    %1160 = vmatpush1.msra.mxu0 0.0
    %1161 = vmatprep.subr.mxu0 0.0
    %1162 = vmatpush1.msra.mxu0 0.0
    %1163 = vmatprep.subr.mxu0 0.0
    %1164 = vmatpush1.msra.mxu0 0.0
    %1165 = vmatprep.subr.mxu0 0.0
    %1166 = vmatpush1.msra.mxu0 0.0
    %1167 = vmatprep.subr.mxu0 0.0
    %1168 = vmatpush1.msra.mxu0 0.0
    %1169 = vmatprep.subr.mxu0 0.0
    %1170 = vmatpush1.msra.mxu0 0.0
    %1171 = vmatprep.subr.mxu0 0.0
    %1172 = vmatpush1.msra.mxu0 0.0
    %1173 = vmatprep.subr.mxu0 0.0
    %1174 = vmatpush1.msra.mxu0 0.0
    %1175 = vmatprep.subr.mxu0 0.0
    %1176 = vmatpush1.msra.mxu0 0.0
    %1177 = vmatprep.subr.mxu0 0.0
    %1178 = vmatpush1.msra.mxu0 0.0
    %1179 = vmatprep.subr.mxu0 0.0
    %1180 = vmatpush1.msra.mxu0 0.0
    %1181 = vmatprep.subr.mxu0 0.0
    %1182 = vmatpush1.msra.mxu0 0.0
    %1183 = vmatprep.subr.mxu0 0.0
    %1184 = vmatpush1.msra.mxu0 0.0
    %1185 = vmatprep.subr.mxu0 0.0
    %1186 = vmatpush1.msra.mxu0 0.0
    %1187 = vmatprep.subr.mxu0 0.0
    %1188 = vmatpush1.msra.mxu0 0.0
    %1189 = vmatprep.subr.mxu0 0.0
    %1190 = vmatpush1.msra.mxu0 0.0
    %1191 = vmatprep.subr.mxu0 0.0
    %1192 = vmatpush1.msra.mxu0 0.0
    %1193 = vmatprep.subr.mxu0 0.0
    %1194 = vmatpush1.msra.mxu0 0.0
    %1195 = vmatprep.subr.mxu0 0.0
    %1196 = vmatpush1.msra.mxu0 0.0
    %1197 = vmatprep.subr.mxu0 0.0
    %1198 = vmatpush1.msra.mxu0 0.0
    %1199 = vmatprep.subr.mxu0 0.0
    %1200 = vmatpush1.msra.mxu0 0.0
    %1201 = vmatprep.mubr.f32.mxu0 0.0
    %1202 = vmatmul.mubr.f32.gmra.mrb[0].mxu0 %v1135
    %v1203 = vpop.f32.mrb[0].mxu0
    %v1204 = vadd.f32 0.0, %v1203
    %v1205 = vpop.f32.mrb[0].mxu0
    %1206 = vdwg.mxu0
    %v1208 = vrot.slane %v1204, 2
    %v1210 = vadd.f32 %v388, %v1208
    %v1211 = vxor.u32 %v1210, 2147483648
    %v1212 = vmul.f32 %v1211, 1.442695
    %v1213 = vpow.pop %v1212
    %v1214 = vadd.f32 %v1213, 1.0
    %v1215 = vrcp.pop %v1214
    %v1216 = vmul.f32 1.0, %v1215
    %v1217 = vtanh.pop %v1210
    %v1219 = vrot.slane %v1124, 6
    %v1221 = vmul.f32 %v1216, %v1219
    %1223 = vrot.lane.b32.xlu0 %v1217, 64
    %v1224 = vpop.permute.xlu0 %1223
    %v1226 = vmul.f32 %v1216, %v1224
    %1228 = vrot.lane.b32.xlu0 %v1226, 32
    %v1229 = vpop.permute.xlu0 %1228
    %v1231 = vadd.f32 %v1221, %v1229
    %v1232 = vtanh.pop %v1231
    %1234 = vrot.lane.b32.xlu0 %v1232, 64
    %v1235 = vpop.permute.xlu0 %1234
    %v1237 = vmul.f32 %v1216, %v1235
    %vm1238 = vcmask 1041408
    %v1239 = vsel %vm1238, %v493, %v599
    %vm1240 = vcmask 1043456
    %v1241 = vsel %vm1240, %v1239, %v706
    %vm1242 = vcmask 1045504
    %v1243 = vsel %vm1242, %v1241, %v813
    %v1244 = vsel %vm1238, %v917, %v1023
    %v1245 = vsel %vm1240, %v1244, %v1130
    %v1246 = vsel %vm1242, %v1245, %v1237
    %v1247 = vld [vmem:[%s4] sm:$0xff]
    %v1248 = vld [vmem:[%s4 + $0x8] sm:$0xff]
    %v1249 = vld [vmem:[%s4 + $0x10] sm:$0xff]
    %v1250 = vld [vmem:[%s4 + $0x18] sm:$0xff]
    %v1251 = vld [vmem:[%s5] sm:$0x1]
    %v1253 = vlaneseq
    %v1254 = vshrl.u32 %v1253, 7
    %v1255 = vsub.s32 0, %v1254
    %v1256 = vrot.slane %v1251, %v1255
    %1260 = vrot.lane.b32.xlu0 %v1243, 32
    %v1261 = vpop.permute.xlu0 %1260
    %1262 = vrot.lane.b32.xlu0 %v1246, 32
    %v1263 = vpop.permute.xlu0 %1262
    %v1264 = vsel %vm395, %v1261, 0
    %v1266 = vsel %vm395, %v1263, 0
    %1268 = vmatprep.subr.mxu0 0.0
    %1269 = vmatpush1.msra.mxu0 %v1247
    %1270 = vmatprep.subr.mxu0 0.0
    %1271 = vmatpush1.msra.mxu0 %v1248
    %1272 = vmatprep.subr.mxu0 0.0
    %1273 = vmatpush1.msra.mxu0 %v1249
    %1274 = vmatprep.subr.mxu0 0.0
    %1275 = vmatpush1.msra.mxu0 %v1250
    %1276 = vmatprep.subr.mxu0 0.0
    %1277 = vmatpush1.msra.mxu0 0.0
    %1278 = vmatprep.subr.mxu0 0.0
    %1279 = vmatpush1.msra.mxu0 0.0
    %1280 = vmatprep.subr.mxu0 0.0
    %1281 = vmatpush1.msra.mxu0 0.0
    %1282 = vmatprep.subr.mxu0 0.0
    %1283 = vmatpush1.msra.mxu0 0.0
    %1284 = vmatprep.subr.mxu0 0.0
    %1285 = vmatpush1.msra.mxu0 0.0
    %1286 = vmatprep.subr.mxu0 0.0
    %1287 = vmatpush1.msra.mxu0 0.0
    %1288 = vmatprep.subr.mxu0 0.0
    %1289 = vmatpush1.msra.mxu0 0.0
    %1290 = vmatprep.subr.mxu0 0.0
    %1291 = vmatpush1.msra.mxu0 0.0
    %1292 = vmatprep.subr.mxu0 0.0
    %1293 = vmatpush1.msra.mxu0 0.0
    %1294 = vmatprep.subr.mxu0 0.0
    %1295 = vmatpush1.msra.mxu0 0.0
    %1296 = vmatprep.subr.mxu0 0.0
    %1297 = vmatpush1.msra.mxu0 0.0
    %1298 = vmatprep.subr.mxu0 0.0
    %1299 = vmatpush1.msra.mxu0 0.0
    %1300 = vmatprep.subr.mxu0 0.0
    %1301 = vmatpush1.msra.mxu0 0.0
    %1302 = vmatprep.subr.mxu0 0.0
    %1303 = vmatpush1.msra.mxu0 0.0
    %1304 = vmatprep.subr.mxu0 0.0
    %1305 = vmatpush1.msra.mxu0 0.0
    %1306 = vmatprep.subr.mxu0 0.0
    %1307 = vmatpush1.msra.mxu0 0.0
    %1308 = vmatprep.subr.mxu0 0.0
    %1309 = vmatpush1.msra.mxu0 0.0
    %1310 = vmatprep.subr.mxu0 0.0
    %1311 = vmatpush1.msra.mxu0 0.0
    %1312 = vmatprep.subr.mxu0 0.0
    %1313 = vmatpush1.msra.mxu0 0.0
    %1314 = vmatprep.subr.mxu0 0.0
    %1315 = vmatpush1.msra.mxu0 0.0
    %1316 = vmatprep.subr.mxu0 0.0
    %1317 = vmatpush1.msra.mxu0 0.0
    %1318 = vmatprep.subr.mxu0 0.0
    %1319 = vmatpush1.msra.mxu0 0.0
    %1320 = vmatprep.subr.mxu0 0.0
    %1321 = vmatpush1.msra.mxu0 0.0
    %1322 = vmatprep.subr.mxu0 0.0
    %1323 = vmatpush1.msra.mxu0 0.0
    %1324 = vmatprep.subr.mxu0 0.0
    %1325 = vmatpush1.msra.mxu0 0.0
    %1326 = vmatprep.subr.mxu0 0.0
    %1327 = vmatpush1.msra.mxu0 0.0
    %1328 = vmatprep.subr.mxu0 0.0
    %1329 = vmatpush1.msra.mxu0 0.0
    %1330 = vmatprep.subr.mxu0 0.0
    %1331 = vmatpush1.msra.mxu0 0.0
    %1332 = vmatprep.mubr.f32.mxu0 0.0
    %1333 = vmatmul.mubr.f32.gmra.mrb[0].mxu0 %v1264
    %v1334 = vpop.f32.mrb[0].mxu0
    %v1335 = vadd.f32 %v1256, %v1334
    %v1336 = vpop.f32.mrb[0].mxu0
    %1337 = vmatprep.mubr.f32.mxu0 0.0
    %1338 = vmatmul.mubr.f32.gmra.mrb[0].mxu0 %v1266
    %v1339 = vpop.f32.mrb[0].mxu0
    %v1340 = vadd.f32 %v1256, %v1339
    %v1341 = vpop.f32.mrb[0].mxu0
    %1342 = vdwg.mxu0
    %vm1343 = vcmask 64512
    %1344 = vst.msk [vmem:[%s6] sm:$0xff] %vm1343, %v1335
    %1345 = vst.msk [vmem:[%s6 + $0x8] sm:$0xff] %vm1343, %v1340
    // Predicated region
    $region34: #{tpu_custom_call.1} parent=1 // pred_check
      _
    $region35: #{tpu_custom_call.1} parent=1 // pred_check_branch
      %1347 = sbr.rel (0) target = $region37
    $region36: #{tpu_custom_call.1} parent=1 // pred_region
      _
    $region37: #{tpu_custom_call.1} parent=1 // pred_fallthru
      _
    // Predicated region
    $region38: #{tpu_custom_call.1} parent=1 // pred_check
      _
    $region39: #{tpu_custom_call.1} parent=1 // pred_check_branch
      %1349 = sbr.rel (0) target = $region41
    $region40: #{tpu_custom_call.1} parent=1 // pred_region
      _
    $region41: #{tpu_custom_call.1} parent=1 // pred_fallthru
      _
    %1350 = vsyncpa [#allocation3], 1
    %1351 = vsyncpa [#allocation5], 1

</llo_original>
